<compile_context>
chip_gen: v7x
topology: tpu7x:2x2x1
jax: 0.10.0
libtpu: 0.0.40
codegen_flags: <defaults>
</compile_context>

<pallas_src>
import functools

import jax
import jax.numpy as jnp
from jax.experimental import pallas as pl
from jax.experimental.pallas import tpu as pltpu


def _round_up(n, m):
    return ((n + m - 1) // m) * m


@functools.lru_cache(maxsize=None)
def _vmem_capacity_bytes():
    """Physical VMEM capacity (per core); conservative fallback if unavailable."""
    try:
        return int(pltpu.get_tpu_info().vmem_capacity_bytes)
    except Exception:  # hardware-introspection probe only; not masking kernel errors
        return 64 * 1024 * 1024


@functools.lru_cache(maxsize=None)
def _supports_single_buffering():
    """One-time feature probe: can grid-constant blocks be single-buffered
    (pipeline_mode=pl.Buffered(1))?  Compiles/runs a tiny probe kernel once so a
    failure here never masks errors in the real kernel build."""
    def _probe_kernel(a_ref, o_ref):
        o_ref[...] = a_ref[...] + 1.0

    try:
        fn = pl.pallas_call(
            _probe_kernel,
            out_shape=jax.ShapeDtypeStruct((16, 128), jnp.float32),
            grid=(2,),
            in_specs=[pl.BlockSpec((8, 128), lambda i: (0, 0),
                                   pipeline_mode=pl.Buffered(1))],
            out_specs=pl.BlockSpec((8, 128), lambda i: (i, 0)),
        )
        jax.block_until_ready(fn(jnp.zeros((8, 128), jnp.float32)))
        return True
    except Exception:  # capability probe: any failure -> feature off
        return False


def _feature_map_kernel(x_ref, w1_ref, b1_ref, w2_ref, b2_ref, g_ref, beta_ref,
                        o_ref):
    """One batch tile: linear -> relu -> linear -> layernorm -> l2 normalize."""
    f32 = jnp.float32
    mm_dtype = w1_ref.dtype

    # layer1 + ReLU: bf16 MXU feed (cast in-kernel; no wrapper pass over x),
    # f32 accumulate, f32 epilogue (v5e has no bf16 VPU/EUP).
    x = x_ref[...].astype(mm_dtype)
    h = jnp.dot(x, w1_ref[...], preferred_element_type=f32) + b1_ref[...]
    h = jnp.maximum(h, 0.0)

    # layer2 (re-quantize activations to the matmul dtype for the MXU).
    y = jnp.dot(h.astype(mm_dtype), w2_ref[...],
                preferred_element_type=f32) + b2_ref[...]

    # LayerNorm over the last dim, eps = 1e-5 (torch default).
    # One-pass variance E[y^2] - mean^2: no padded lanes exist, no masking needed.
    inv_n = 1.0 / y.shape[-1]
    mean = jnp.sum(y, axis=-1, keepdims=True) * inv_n
    var = jnp.sum(y * y, axis=-1, keepdims=True) * inv_n - mean * mean
    y_hat = (y - mean) * jax.lax.rsqrt(jnp.maximum(var, 0.0) + 1e-5)
    y_hat = y_hat * g_ref[...] + beta_ref[...]

    # F.normalize(p=2, dim=-1): rsqrt-multiply (EUP) instead of sqrt + divide.
    # x * rsqrt(max(sum(x^2), 1e-24)) == x / max(||x||_2, 1e-12).
    sumsq = jnp.sum(y_hat * y_hat, axis=-1, keepdims=True)
    o_ref[...] = (y_hat * jax.lax.rsqrt(jnp.maximum(sumsq, 1e-24))).astype(o_ref.dtype)


def feature_map_forward(x, w1, b1, w2, b2, gamma, beta, *,
                        tile_b=None, matmul_dtype=jnp.bfloat16, out_dtype=None):
    """x: [B, input_dim]; w1: [input_dim, hidden]; w2: [hidden, output_dim].

    NOTE: bf16 MXU feed (x, h, W1, W2) with f32 accumulation is an intentional
    ~1e-3-level accuracy tradeoff vs the fp32 torch module; pass
    matmul_dtype=jnp.float32 for full fp32 parity.  Pass out_dtype=jnp.bfloat16
    to halve output HBM traffic if the consumer tolerates it.
    """
    B, input_dim = x.shape
    hidden_dim = w1.shape[1]
    output_dim = w2.shape[1]
    out_dtype = x.dtype if out_dtype is None else out_dtype

    vmem_cap = _vmem_capacity_bytes()

    # Batch tiling: aim for >= ~8 grid steps (>= 4 per TensorCore on 2-core
    # chips) so x-DMA / output writeback pipeline behind compute and the
    # ~0.35us per-step overhead is amortized; cap the tile per-chip VMEM class.
    if tile_b is None:
        tile_cap = 1024 if vmem_cap >= 96 * 1024 * 1024 else 512
        tile_b = min(tile_cap, max(128, _round_up(pl.cdiv(B, 8), 8)))
    tile_b = max(8, min(_round_up(tile_b, 8), _round_up(B, 8)))
    grid = (pl.cdiv(B, tile_b),)

    # Weights are small and grid-constant: cast to the MXU feed dtype once in
    # the wrapper.  x (the large per-call stream) is NOT touched here.
    w1m = w1.astype(matmul_dtype)
    w2m = w2.astype(matmul_dtype)
    b1r = b1.reshape(1, hidden_dim).astype(jnp.float32)
    b2r = b2.reshape(1, output_dim).astype(jnp.float32)
    gr = gamma.reshape(1, output_dim).astype(jnp.float32)
    br = beta.reshape(1, output_dim).astype(jnp.float32)

    # Single-buffer grid-constant operands when supported (saves resident VMEM,
    # which matters on v7x's 64 MiB per-core VMEM).
    const_kwargs = ({"pipeline_mode": pl.Buffered(1)}
                    if _supports_single_buffering() else {})
    n_const_bufs = 1 if const_kwargs else 2

    # Explicit VMEM budget: streams + resident weights + live f32 epilogue temps.
    mm_b = jnp.dtype(matmul_dtype).itemsize
    x_b = jnp.dtype(x.dtype).itemsize
    o_b = jnp.dtype(out_dtype).itemsize
    f32_b = 4
    vmem_est = (
        2 * tile_b * input_dim * x_b                                     # x tile (double buffered)
        + 2 * tile_b * output_dim * o_b                                  # out tile (double buffered)
        + n_const_bufs * (input_dim * hidden_dim + hidden_dim * output_dim) * mm_b
        + n_const_bufs * (hidden_dim + 3 * output_dim) * f32_b
        # live f32 temps: cast-x, h (x2 for relu/cast), y/mean/var/y_hat/sumsq.
        + tile_b * (input_dim + 2 * hidden_dim + 4 * output_dim) * f32_b
    )
    vmem_limit = int(min(max(2 * vmem_est, 32 * 1024 * 1024),
                         int(0.8 * vmem_cap)))

    # TODO(synk): for production dims where bf16 W1/W2 (each TensorCore holds its
    # own copy under megacore sharding) approach the per-core VMEM budget
    # (v7x: 64 MiB), add an "arbitrary" K grid axis with an f32 VMEM accumulator
    # instead of shrinking tile_b.

    kernel_fn = pl.pallas_call(
        _feature_map_kernel,
        out_shape=jax.ShapeDtypeStruct((B, output_dim), out_dtype),
        grid_spec=pltpu.PrefetchScalarGridSpec(
            num_scalar_prefetch=0,
            grid=grid,
            in_specs=[
                # x: unpadded, uncast; last block dim == full array dim (legal).
                pl.BlockSpec((tile_b, input_dim), lambda i: (i, 0)),
                pl.BlockSpec((input_dim, hidden_dim), lambda i: (0, 0), **const_kwargs),  # W1
                pl.BlockSpec((1, hidden_dim), lambda i: (0, 0), **const_kwargs),          # b1
                pl.BlockSpec((hidden_dim, output_dim), lambda i: (0, 0), **const_kwargs), # W2
                pl.BlockSpec((1, output_dim), lambda i: (0, 0), **const_kwargs),          # b2
                pl.BlockSpec((1, output_dim), lambda i: (0, 0), **const_kwargs),          # gamma
                pl.BlockSpec((1, output_dim), lambda i: (0, 0), **const_kwargs),          # beta
            ],
            out_specs=pl.BlockSpec((tile_b, output_dim), lambda i: (i, 0)),
        ),
        compiler_params=pltpu.CompilerParams(
            dimension_semantics=("parallel",),
            vmem_limit_bytes=vmem_limit,
        ),
    )
    return kernel_fn(x, w1m, b1r, w2m, b2r, gr, br)


def init_params(key, input_dim, hidden_dim, output_dim):
    """Deterministic init mimicking torch.nn.Linear default (uniform +/- 1/sqrt(fan_in))."""
    k1, k2, k3, k4 = jax.random.split(key, 4)
    lim1 = 1.0 / (input_dim ** 0.5)
    lim2 = 1.0 / (hidden_dim ** 0.5)
    w1 = jax.random.uniform(k1, (input_dim, hidden_dim), jnp.float32, -lim1, lim1)
    b1 = jax.random.uniform(k2, (hidden_dim,), jnp.float32, -lim1, lim1)
    w2 = jax.random.uniform(k3, (hidden_dim, output_dim), jnp.float32, -lim2, lim2)
    b2 = jax.random.uniform(k4, (output_dim,), jnp.float32, -lim2, lim2)
    gamma = jnp.ones((output_dim,), jnp.float32)   # LayerNorm weight
    beta = jnp.zeros((output_dim,), jnp.float32)   # LayerNorm bias
    return w1, b1, w2, b2, gamma, beta


def _reference(x, w1, b1, w2, b2, gamma, beta):
    """Pure-JAX reference emulating the kernel's bf16-in / f32-accumulate matmuls."""
    f32 = jnp.float32
    hp = jax.lax.Precision.HIGHEST
    xr = x.astype(jnp.bfloat16).astype(f32)
    w1r = w1.astype(jnp.bfloat16).astype(f32)
    w2r = w2.astype(jnp.bfloat16).astype(f32)
    h = jnp.maximum(jnp.dot(xr, w1r, precision=hp) + b1, 0.0)
    hr = h.astype(jnp.bfloat16).astype(f32)
    y = jnp.dot(hr, w2r, precision=hp) + b2
    mean = jnp.mean(y, axis=-1, keepdims=True)
    var = jnp.mean((y - mean) ** 2, axis=-1, keepdims=True)
    y = (y - mean) / jnp.sqrt(var + 1e-5) * gamma + beta
    l2 = jnp.sqrt(jnp.sum(y * y, axis=-1, keepdims=True))
    return y / jnp.maximum(l2, 1e-12)


if __name__ == "__main__":
    input_dim, hidden_dim, output_dim = 16, 32, 24
    batch = 500   # not a multiple of tile_b=128: exercises the masked partial last block

    key = jax.random.PRNGKey(0)
    kx, kp = jax.random.split(key)
    x = jax.random.normal(kx, (batch, input_dim), jnp.float32)
    w1, b1, w2, b2, gamma, beta = init_params(kp, input_dim, hidden_dim, output_dim)

    out = feature_map_forward(x, w1, b1, w2, b2, gamma, beta)
    out = jax.block_until_ready(out)

    ref = _reference(x, w1, b1, w2, b2, gamma, beta)
    assert out.shape == (batch, output_dim)
    max_err = float(jnp.max(jnp.abs(out - ref)))
    assert jnp.allclose(out, ref, atol=3e-3, rtol=3e-3), (
        f"mismatch vs reference (max abs err {max_err})")

    print("KERNEL_OK")
</pallas_src>

<mosaic_0001>
module attributes {stable_mosaic.version = 11 : i64} {
  func.func @_probe_kernel(%arg0: i32, %arg1: memref<8x128xf32, #tpu.memory_space<vmem>>, %arg2: memref<8x128xf32, #tpu.memory_space<vmem>>) attributes {dimension_semantics = [#tpu.dimension_semantics<arbitrary>], iteration_bounds = array<i64: 2>, scalar_prefetch = 0 : i64, scratch_operands = 0 : i64, tpu.core_type = #tpu.core_type<tc>, window_params = [{pipeline_mode = #tpu.pipeline_mode<synchronous>, transform_indices = @transform_0, window_bounds = array<i64: 8, 128>}, {transform_indices = @transform_1, window_bounds = array<i64: 8, 128>}]} {
    %c0 = arith.constant 0 : index
    %c0_0 = arith.constant 0 : index
    %0 = vector.load %arg1[%c0, %c0_0] : memref<8x128xf32, #tpu.memory_space<vmem>>, vector<8x128xf32>
    %cst = arith.constant 1.000000e+00 : f32
    %1 = vector.broadcast %cst : f32 to vector<8x128xf32>
    %2 = arith.addf %0, %1 : vector<8x128xf32>
    %c0_1 = arith.constant 0 : index
    %c0_2 = arith.constant 0 : index
    %3 = vector.load %arg2[%c0_1, %c0_2] : memref<8x128xf32, #tpu.memory_space<vmem>>, vector<8x128xf32>
    tpu.vector_store %arg2[%c0_1, %c0_2], %2 {strides = array<i32>} : memref<8x128xf32, #tpu.memory_space<vmem>>, vector<8x128xf32>,
    return
  }
  func.func @transform_0(%arg0: i32) -> (i32, i32) {
    %c0_i32 = arith.constant 0 : i32
    %c0_i32_0 = arith.constant 0 : i32
    %c0_i32_1 = arith.constant 0 : i32
    return %c0_i32, %c0_i32_0 : i32, i32
  }
  func.func @transform_1(%arg0: i32) -> (i32, i32) {
    %c0_i32 = arith.constant 0 : i32
    %c0_i32_0 = arith.constant 0 : i32
    return %arg0, %c0_i32 : i32, i32
  }
}

module attributes {stable_mosaic.version = 11 : i64} {
  func.func @_feature_map_kernel(%arg0: i32, %arg1: memref<128x16xf32, #tpu.memory_space<vmem>>, %arg2: memref<16x32xbf16, #tpu.memory_space<vmem>>, %arg3: memref<1x32xf32, #tpu.memory_space<vmem>>, %arg4: memref<32x24xbf16, #tpu.memory_space<vmem>>, %arg5: memref<1x24xf32, #tpu.memory_space<vmem>>, %arg6: memref<1x24xf32, #tpu.memory_space<vmem>>, %arg7: memref<1x24xf32, #tpu.memory_space<vmem>>, %arg8: memref<128x24xf32, #tpu.memory_space<vmem>>) attributes {dimension_semantics = [#tpu.dimension_semantics<parallel>], iteration_bounds = array<i64: 4>, scalar_prefetch = 0 : i64, scratch_operands = 0 : i64, tpu.core_type = #tpu.core_type<tc>, window_params = [{transform_indices = @transform_0, window_bounds = array<i64: 128, 16>}, {pipeline_mode = #tpu.pipeline_mode<synchronous>, transform_indices = @transform_1, window_bounds = array<i64: 16, 32>}, {pipeline_mode = #tpu.pipeline_mode<synchronous>, transform_indices = @transform_2, window_bounds = array<i64: 1, 32>}, {pipeline_mode = #tpu.pipeline_mode<synchronous>, transform_indices = @transform_3, window_bounds = array<i64: 32, 24>}, {pipeline_mode = #tpu.pipeline_mode<synchronous>, transform_indices = @transform_4, window_bounds = array<i64: 1, 24>}, {pipeline_mode = #tpu.pipeline_mode<synchronous>, transform_indices = @transform_5, window_bounds = array<i64: 1, 24>}, {pipeline_mode = #tpu.pipeline_mode<synchronous>, transform_indices = @transform_6, window_bounds = array<i64: 1, 24>}, {transform_indices = @transform_7, window_bounds = array<i64: 128, 24>}]} {
    %c0 = arith.constant 0 : index
    %c0_0 = arith.constant 0 : index
    %0 = vector.load %arg1[%c0, %c0_0] : memref<128x16xf32, #tpu.memory_space<vmem>>, vector<128x16xf32>
    %1 = arith.truncf %0 : vector<128x16xf32> to vector<128x16xbf16>
    %c0_1 = arith.constant 0 : index
    %c0_2 = arith.constant 0 : index
    %2 = vector.load %arg2[%c0_1, %c0_2] : memref<16x32xbf16, #tpu.memory_space<vmem>>, vector<16x32xbf16>
    %cst = arith.constant dense<0.000000e+00> : vector<128x32xf32>
    %3 = tpu.matmul %1, %2, %cst {dimension_numbers = #tpu.dot_dimension_numbers<[1], [0], [0], [1], [0, 0, 1, 1], [], []>} : vector<128x16xbf16>, vector<16x32xbf16>, vector<128x32xf32> -> vector<128x32xf32>
    %c0_3 = arith.constant 0 : index
    %c0_4 = arith.constant 0 : index
    %4 = vector.load %arg3[%c0_3, %c0_4] : memref<1x32xf32, #tpu.memory_space<vmem>>, vector<1x32xf32>
    %5 = vector.broadcast %4 : vector<1x32xf32> to vector<128x32xf32>
    %6 = arith.addf %3, %5 : vector<128x32xf32>
    %cst_5 = arith.constant 0.000000e+00 : f32
    %7 = vector.broadcast %cst_5 : f32 to vector<128x32xf32>
    %8 = arith.maximumf %6, %7 : vector<128x32xf32>
    %9 = arith.truncf %8 : vector<128x32xf32> to vector<128x32xbf16>
    %c0_6 = arith.constant 0 : index
    %c0_7 = arith.constant 0 : index
    %10 = vector.load %arg4[%c0_6, %c0_7] : memref<32x24xbf16, #tpu.memory_space<vmem>>, vector<32x24xbf16>
    %cst_8 = arith.constant dense<0.000000e+00> : vector<128x24xf32>
    %11 = tpu.matmul %9, %10, %cst_8 {dimension_numbers = #tpu.dot_dimension_numbers<[1], [0], [0], [1], [0, 0, 1, 1], [], []>} : vector<128x32xbf16>, vector<32x24xbf16>, vector<128x24xf32> -> vector<128x24xf32>
    %c0_9 = arith.constant 0 : index
    %c0_10 = arith.constant 0 : index
    %12 = vector.load %arg5[%c0_9, %c0_10] : memref<1x24xf32, #tpu.memory_space<vmem>>, vector<1x24xf32>
    %13 = vector.broadcast %12 : vector<1x24xf32> to vector<128x24xf32>
    %14 = arith.addf %11, %13 : vector<128x24xf32>
    %cst_11 = arith.constant dense<0.000000e+00> : vector<128xf32>
    %15 = vector.multi_reduction <add>, %14, %cst_11 [1] : vector<128x24xf32> to vector<128xf32>
    %16 = vector.shape_cast %15 : vector<128xf32> to vector<128x1xf32>
    %cst_12 = arith.constant 0.0416666679 : f32
    %17 = vector.broadcast %cst_12 : f32 to vector<128x1xf32>
    %18 = arith.mulf %16, %17 : vector<128x1xf32>
    %19 = arith.mulf %14, %14 : vector<128x24xf32>
    %cst_13 = arith.constant dense<0.000000e+00> : vector<128xf32>
    %20 = vector.multi_reduction <add>, %19, %cst_13 [1] : vector<128x24xf32> to vector<128xf32>
    %21 = vector.shape_cast %20 : vector<128xf32> to vector<128x1xf32>
    %cst_14 = arith.constant 0.0416666679 : f32
    %22 = vector.broadcast %cst_14 : f32 to vector<128x1xf32>
    %23 = arith.mulf %21, %22 : vector<128x1xf32>
    %24 = arith.mulf %18, %18 : vector<128x1xf32>
    %25 = arith.subf %23, %24 : vector<128x1xf32>
    %26 = vector.broadcast %18 : vector<128x1xf32> to vector<128x24xf32>
    %27 = arith.subf %14, %26 : vector<128x24xf32>
    %cst_15 = arith.constant 0.000000e+00 : f32
    %28 = vector.broadcast %cst_15 : f32 to vector<128x1xf32>
    %29 = arith.maximumf %25, %28 : vector<128x1xf32>
    %cst_16 = arith.constant 9.99999974E-6 : f32
    %30 = vector.broadcast %cst_16 : f32 to vector<128x1xf32>
    %31 = arith.addf %29, %30 : vector<128x1xf32>
    %32 = math.rsqrt %31 : vector<128x1xf32>
    %33 = vector.broadcast %32 : vector<128x1xf32> to vector<128x24xf32>
    %34 = arith.mulf %27, %33 : vector<128x24xf32>
    %c0_17 = arith.constant 0 : index
    %c0_18 = arith.constant 0 : index
    %35 = vector.load %arg6[%c0_17, %c0_18] : memref<1x24xf32, #tpu.memory_space<vmem>>, vector<1x24xf32>
    %36 = vector.broadcast %35 : vector<1x24xf32> to vector<128x24xf32>
    %37 = arith.mulf %34, %36 : vector<128x24xf32>
    %c0_19 = arith.constant 0 : index
    %c0_20 = arith.constant 0 : index
    %38 = vector.load %arg7[%c0_19, %c0_20] : memref<1x24xf32, #tpu.memory_space<vmem>>, vector<1x24xf32>
    %39 = vector.broadcast %38 : vector<1x24xf32> to vector<128x24xf32>
    %40 = arith.addf %37, %39 : vector<128x24xf32>
    %41 = arith.mulf %40, %40 : vector<128x24xf32>
    %cst_21 = arith.constant dense<0.000000e+00> : vector<128xf32>
    %42 = vector.multi_reduction <add>, %41, %cst_21 [1] : vector<128x24xf32> to vector<128xf32>
    %43 = vector.shape_cast %42 : vector<128xf32> to vector<128x1xf32>
    %cst_22 = arith.constant 1.000000e-24 : f32
    %44 = vector.broadcast %cst_22 : f32 to vector<128x1xf32>
    %45 = arith.maximumf %43, %44 : vector<128x1xf32>
    %46 = math.rsqrt %45 : vector<128x1xf32>
    %47 = vector.broadcast %46 : vector<128x1xf32> to vector<128x24xf32>
    %48 = arith.mulf %40, %47 : vector<128x24xf32>
    %c0_23 = arith.constant 0 : index
    %c0_24 = arith.constant 0 : index
    %49 = vector.load %arg8[%c0_23, %c0_24] : memref<128x24xf32, #tpu.memory_space<vmem>>, vector<128x24xf32>
    tpu.vector_store %arg8[%c0_23, %c0_24], %48 {strides = array<i32>} : memref<128x24xf32, #tpu.memory_space<vmem>>, vector<128x24xf32>,
    return
  }
  func.func @transform_0(%arg0: i32) -> (i32, i32) {
    %c0_i32 = arith.constant 0 : i32
    %c0_i32_0 = arith.constant 0 : i32
    return %arg0, %c0_i32 : i32, i32
  }
  func.func @transform_1(%arg0: i32) -> (i32, i32) {
    %c0_i32 = arith.constant 0 : i32
    %c0_i32_0 = arith.constant 0 : i32
    %c0_i32_1 = arith.constant 0 : i32
    return %c0_i32, %c0_i32_0 : i32, i32
  }
  func.func @transform_2(%arg0: i32) -> (i32, i32) {
    %c0_i32 = arith.constant 0 : i32
    %c0_i32_0 = arith.constant 0 : i32
    %c0_i32_1 = arith.constant 0 : i32
    return %c0_i32, %c0_i32_0 : i32, i32
  }
  func.func @transform_3(%arg0: i32) -> (i32, i32) {
    %c0_i32 = arith.constant 0 : i32
    %c0_i32_0 = arith.constant 0 : i32
    %c0_i32_1 = arith.constant 0 : i32
    return %c0_i32, %c0_i32_0 : i32, i32
  }
  func.func @transform_4(%arg0: i32) -> (i32, i32) {
    %c0_i32 = arith.constant 0 : i32
    %c0_i32_0 = arith.constant 0 : i32
    %c0_i32_1 = arith.constant 0 : i32
    return %c0_i32, %c0_i32_0 : i32, i32
  }
  func.func @transform_5(%arg0: i32) -> (i32, i32) {
    %c0_i32 = arith.constant 0 : i32
    %c0_i32_0 = arith.constant 0 : i32
    %c0_i32_1 = arith.constant 0 : i32
    return %c0_i32, %c0_i32_0 : i32, i32
  }
  func.func @transform_6(%arg0: i32) -> (i32, i32) {
    %c0_i32 = arith.constant 0 : i32
    %c0_i32_0 = arith.constant 0 : i32
    %c0_i32_1 = arith.constant 0 : i32
    return %c0_i32, %c0_i32_0 : i32, i32
  }
  func.func @transform_7(%arg0: i32) -> (i32, i32) {
    %c0_i32 = arith.constant 0 : i32
    %c0_i32_0 = arith.constant 0 : i32
    return %arg0, %c0_i32 : i32, i32
  }
}

</mosaic_0001>

<llo_original>
// kernel: tpu_custom_call.1
$region0: #{tpu_custom_call.1}
  #allocation0 [shape = 'u32[]', space=smem, size = 0x4, offset = 0x4, fixed_abs, tag = 'smem constant byte address 0x4 - core index']
  #allocation1 [shape = 'u32[144,128]{1,0:T(1,128)}', space=vmem, size = 0x12000, scoped, tag = 'internal scratch']
  %s0 = inlined_call_operand.hbm [shape: f32[8,128], index: 0, kind: input, shape index: {}]
  %s1 = inlined_call_operand.hbm [shape: f32[16,128], index: 1, kind: output, shape index: {}]
  %s2 = sld [smem:[#allocation0]]
  $region41: #{tpu_custom_call.1} parent=0
    _
  %s4 = ssub.s32 1, %s2
  %s5 = scalar_select 0, %s4, %s2
  $region1: #{tpu_custom_call.1} parent=0
    #allocation2 [shape = 'u8[4096]{0}', space=vmem, size = 0x1000, scoped, tag = 'input window, operand 0, single buffered']
    #allocation3 [shape = 's32[2]{0}', space=sflag, size = 0x8, scoped, tag = 'scoped memory for tpu_custom_call.1']
    #allocation4 [shape = 's32[2]{0}', space=sflag, size = 0x8, scoped, tag = 'scoped memory for tpu_custom_call.1']
    #allocation5 [shape = 'u8[8192]{0}', space=vmem, size = 0x2000, scoped, tag = 'output window, operand 0']
    %6 = vsyncpa [#allocation3], 0
    %7 = vsyncpa [#allocation4], 0
    %s8 = scalar_lea.sflag [#allocation4], 1
    %9 = vsyncpa %s8, 0
    loop: start=0, step=1, limit=4
    $region2: #{tpu_custom_call.1} parent=1 // loop_pre_header
      _
    $region3: #{tpu_custom_call.1} parent=1 // loop_header
      %s11 = sphi 0, %s15
      %p12 = scmp.ge.s32.totalorder %s11, 4
      %s19 = sphi 0, %s19
      %s21 = sphi 0, %s19
      %s22 = sphi 0, %s21
      %s36 = sphi 0, %s22
      %s42 = sphi 0, %s44
      %s45 = sphi 0, %s42
      %s46 = sphi 0, %s45
      %s62 = sphi 0, %s46
    $region4: #{tpu_custom_call.1} parent=1 // loop_header_branch
      %14 = sbr.rel (%p12) target = $region8
    $region5: #{tpu_custom_call.1} parent=1 // loop_body
      %s16 = ssub.s32 %s11, 1
      %s17 = ssub.s32 %s11, 2
      %s18 = sadd.s32 %s11, 1
      %s20 = sadd.s32 %s19, 1
      %p23 = scmp.eq.s32.totalorder %s11, 1
      %p24 = scmp.ne.s32.totalorder %s19, %s21
      %p25 = scmp.eq.s32.totalorder %s11, 0
      %p26 = por %p24, %p25
      %p27 = scmp.ne.s32.totalorder %s19, %s21
      %p28 = scmp.eq.s32.totalorder %s16, 1
      %p29 = por %p27, %p28
      %p30 = scmp.ne.s32.totalorder %s21, %s22
      %p31 = scmp.eq.s32.totalorder %s16, 0
      %p32 = por %p30, %p31
      %p33 = scmp.ne.s32.totalorder %s21, %s22
      %p34 = scmp.eq.s32.totalorder %s17, 1
      %p35 = por %p33, %p34
      %p37 = scmp.ne.s32.totalorder %s22, %s36
      %p38 = scmp.eq.s32.totalorder %s17, 0
      %p39 = por %p37, %p38
      %s40 = ssub.s32 %s11, %s18
      %p41 = scmp.eq.s32.totalorder %s40, 0
      %s43 = sadd.s32 %s42, 1
      %s44 = scalar_select %p41, %s42, %s43
      %p47 = pneg %p41
      %p48 = scmp.eq.s32.totalorder %s11, 1
      %p49 = por %p47, %p48
      %p50 = scmp.ne.s32.totalorder %s42, %s45
      %p51 = scmp.eq.s32.totalorder %s11, 0
      %p52 = por %p50, %p51
      %p53 = scmp.ne.s32.totalorder %s42, %s45
      %p54 = scmp.eq.s32.totalorder %s16, 1
      %p55 = por %p53, %p54
      %p56 = scmp.ne.s32.totalorder %s45, %s46
      %p57 = scmp.eq.s32.totalorder %s16, 0
      %p58 = por %p56, %p57
      %p59 = scmp.ne.s32.totalorder %s45, %s46
      %p60 = scmp.eq.s32.totalorder %s17, 1
      %p61 = por %p59, %p60
      %p63 = scmp.ne.s32.totalorder %s46, %s62
      %p64 = scmp.eq.s32.totalorder %s17, 0
      %p65 = por %p63, %p64
      %p66 = scmp.le.s32.totalorder 1, %s11
      %p67 = scmp.lt.s32.totalorder %s11, 3
      %p68 = pnand %p66, %p67
      %p69 = pneg %p68
      // Predicated region
      $region9: #{tpu_custom_call.1} parent=5 // pred_check
        _
      $region10: #{tpu_custom_call.1} parent=5 // pred_check_branch
        %71 = sbr.rel (%p68) target = $region12
      $region11: #{tpu_custom_call.1} parent=5 // pred_region
        %s72 = ssub.s32 %s11, 1
        // Predicated region
        $region13: #{tpu_custom_call.1} parent=11 // pred_check
          %p73 = pneg %p32
        $region14: #{tpu_custom_call.1} parent=11 // pred_check_branch
          %75 = sbr.rel (%p73) target = $region16
        $region15: #{tpu_custom_call.1} parent=11 // pred_region
          %s77 = ssub.s32 128, 128
          %78 = vsyncadd [#allocation3], %s77
          %s80 = sshll.u32 [#allocation2], 4
          %s81 = int_to_ptr.vmem [resolvable:$true] %s80
          %83 = dma.hbm_to_vmem [thread:$0]  %s0, 128, %s81, [#allocation3]
        $region16: #{tpu_custom_call.1} parent=11 // pred_fallthru
          _
      $region12: #{tpu_custom_call.1} parent=5 // pred_fallthru
        _
      %p84 = scmp.lt.s32.totalorder %s11, 2
      // Predicated region
      $region17: #{tpu_custom_call.1} parent=5 // pred_check
        %p85 = pneg %p84
      $region18: #{tpu_custom_call.1} parent=5 // pred_check_branch
        %87 = sbr.rel (%p85) target = $region20
      $region19: #{tpu_custom_call.1} parent=5 // pred_region
        _
      $region20: #{tpu_custom_call.1} parent=5 // pred_fallthru
        _
      %p88 = scmp.le.s32.totalorder 1, %s11
      %p89 = scmp.lt.s32.totalorder %s11, 3
      %p90 = pnand %p88, %p89
      %p91 = pneg %p90
      // Predicated region
      $region21: #{tpu_custom_call.1} parent=5 // pred_check
        _
      $region22: #{tpu_custom_call.1} parent=5 // pred_check_branch
        %93 = sbr.rel (%p90) target = $region24
      $region23: #{tpu_custom_call.1} parent=5 // pred_region
        %s94 = ssub.s32 %s11, 1
        // Predicated region
        $region25: #{tpu_custom_call.1} parent=23 // pred_check
          %p95 = pneg %p32
        $region26: #{tpu_custom_call.1} parent=23 // pred_check_branch
          %97 = sbr.rel (%p95) target = $region28
        $region27: #{tpu_custom_call.1} parent=23 // pred_region
          %98 = dma.done [#allocation3], 128
        $region28: #{tpu_custom_call.1} parent=23 // pred_fallthru
          _
        %p99 = pneg %p32
        %p100 = pneg %p29
        %p101 = pneg %p58
        %p102 = pneg %p55
        %s103 = sand.u32 %s45, 1
        %s104 = scalar_lea.sflag [#allocation4], %s103
        %s105 = sand.u32 %s45, 1
        %s106 = smul.addr %s105, 8
        %s107 = scalar_lea.vmem [#allocation5], %s106
        %v108 = vld [vmem:[#allocation2] sm:$0xff]
        %v109 = vadd.f32 %v108, 1.0
        %110 = vst [vmem:[%s107] sm:$0xff] %v109
        %s111 = sand.u32 %s45, 1
        %s112 = scalar_lea.sflag [#allocation4], %s111
        %s113 = sand.u32 %s45, 1
        %s114 = smul.addr %s113, 8
        %s115 = scalar_lea.vmem [#allocation5], %s114
        // Predicated region
        $region29: #{tpu_custom_call.1} parent=23 // pred_check
          %p116 = pneg %p55
        $region30: #{tpu_custom_call.1} parent=23 // pred_check_branch
          %118 = sbr.rel (%p116) target = $region32
        $region31: #{tpu_custom_call.1} parent=23 // pred_region
          %s120 = ssub.s32 128, 128
          %121 = vsyncadd %s112, %s120
          %s122 = smul.addr %s16, 128
          %s123 = scalar_lea.hbm %s1, %s122
          %s125 = sshll.u32 %s115, 4
          %s126 = int_to_ptr.vmem [resolvable:$true] %s125
          %128 = dma.vmem_to_hbm [thread:$0]  %s126, 128, %s123, %s112
        $region32: #{tpu_custom_call.1} parent=23 // pred_fallthru
          _
      $region24: #{tpu_custom_call.1} parent=5 // pred_fallthru
        _
      %p129 = scmp.le.s32.totalorder 2, %s11
      // Predicated region
      $region33: #{tpu_custom_call.1} parent=5 // pred_check
        %p130 = pneg %p129
      $region34: #{tpu_custom_call.1} parent=5 // pred_check_branch
        %132 = sbr.rel (%p130) target = $region36
      $region35: #{tpu_custom_call.1} parent=5 // pred_region
        %s133 = ssub.s32 %s11, 2
        // Predicated region
        $region37: #{tpu_custom_call.1} parent=35 // pred_check
          %p134 = pneg %p61
        $region38: #{tpu_custom_call.1} parent=35 // pred_check_branch
          %136 = sbr.rel (%p134) target = $region40
        $region39: #{tpu_custom_call.1} parent=35 // pred_region
          %s137 = sand.u32 %s46, 1
          %s138 = scalar_lea.sflag [#allocation4], %s137
          %s139 = sand.u32 %s46, 1
          %s140 = smul.addr %s139, 8
          %s141 = scalar_lea.vmem [#allocation5], %s140
          %142 = dma.done %s138, 128
        $region40: #{tpu_custom_call.1} parent=35 // pred_fallthru
          _
      $region36: #{tpu_custom_call.1} parent=5 // pred_fallthru
        _
    $region6: #{tpu_custom_call.1} parent=1 // loop_footer
      %s15 = sadd.s32 1, %s11
    $region7: #{tpu_custom_call.1} parent=1 // loop_footer_branch
      %10 = sbr.rel target = $region3
    $region8: #{tpu_custom_call.1} parent=1 // loop_exit
      _
    %143 = vsyncpa [#allocation3], 1
    %s144 = scalar_lea.sflag [#allocation3], 1
    %145 = vsyncpa %s144, 1
    %146 = vsyncpa [#allocation4], 1
    %s147 = scalar_lea.sflag [#allocation4], 1
    %148 = vsyncpa %s147, 1

// kernel: tpu_custom_call.1
$region0: #{tpu_custom_call.1}
  #allocation0 [shape = 'u32[]', space=smem, size = 0x4, offset = 0x4, fixed_abs, tag = 'smem constant byte address 0x4 - core index']
  #allocation1 [shape = 'u32[144,128]{1,0:T(1,128)}', space=vmem, size = 0x12000, scoped, tag = 'internal scratch']
  %s0 = inlined_call_operand.vmem [shape: f32[500,16], index: 0, kind: input, shape index: {}]
  %s1 = inlined_call_operand.vmem [shape: bf16[16,32], index: 1, kind: input, shape index: {}]
  %s2 = inlined_call_operand.vmem [shape: f32[1,32], index: 2, kind: input, shape index: {}]
  %s3 = inlined_call_operand.vmem [shape: bf16[32,24], index: 3, kind: input, shape index: {}]
  %s4 = inlined_call_operand.vmem [shape: f32[1,24], index: 4, kind: input, shape index: {}]
  %s5 = inlined_call_operand.vmem [shape: f32[1,24], index: 5, kind: input, shape index: {}]
  %s6 = inlined_call_operand.vmem [shape: f32[1,24], index: 6, kind: input, shape index: {}]
  %s7 = inlined_call_operand.vmem [shape: f32[500,24], index: 7, kind: output, shape index: {}]
  %s8 = sld [smem:[#allocation0]]
  $region109: #{tpu_custom_call.1} parent=0
    _
  %s10 = ssub.s32 1, %s8
  %s11 = scalar_select 0, %s10, %s8
  $region1: #{tpu_custom_call.1} parent=0
    #allocation2 [shape = 'u8[131072]{0}', space=vmem, size = 0x20000, scoped, tag = 'output window, operand 0']
    loop: start=0, step=1, limit=6
    $region2: #{tpu_custom_call.1} parent=1 // loop_pre_header
      _
    $region3: #{tpu_custom_call.1} parent=1 // loop_header
      %s13 = sphi 0, %s17
      %p14 = scmp.ge.s32.totalorder %s13, 6
      %s23 = sphi 0, %s25
      %s26 = sphi 0, %s23
      %s27 = sphi 0, %s26
      %s43 = sphi 0, %s27
      %s47 = sphi 0, %s47
      %s49 = sphi 0, %s47
      %s50 = sphi 0, %s49
      %s64 = sphi 0, %s50
      %s68 = sphi 0, %s68
      %s70 = sphi 0, %s68
      %s71 = sphi 0, %s70
      %s85 = sphi 0, %s71
      %s89 = sphi 0, %s89
      %s91 = sphi 0, %s89
      %s92 = sphi 0, %s91
      %s106 = sphi 0, %s92
      %s110 = sphi 0, %s110
      %s112 = sphi 0, %s110
      %s113 = sphi 0, %s112
      %s127 = sphi 0, %s113
      %s131 = sphi 0, %s131
      %s133 = sphi 0, %s131
      %s134 = sphi 0, %s133
      %s148 = sphi 0, %s134
      %s152 = sphi 0, %s152
      %s154 = sphi 0, %s152
      %s155 = sphi 0, %s154
      %s169 = sphi 0, %s155
      %s175 = sphi 0, %s177
      %s178 = sphi 0, %s175
      %s179 = sphi 0, %s178
      %s195 = sphi 0, %s179
    $region4: #{tpu_custom_call.1} parent=1 // loop_header_branch
      %16 = sbr.rel (%p14) target = $region8
    $region5: #{tpu_custom_call.1} parent=1 // loop_body
      %s18 = ssub.s32 %s13, 1
      %s19 = ssub.s32 %s13, 2
      %s20 = sadd.s32 %s13, 1
      %s21 = ssub.s32 %s13, %s20
      %p22 = scmp.eq.s32.totalorder %s21, 0
      %s24 = sadd.s32 %s23, 1
      %s25 = scalar_select %p22, %s23, %s24
      %p28 = pneg %p22
      %p29 = scmp.eq.s32.totalorder %s13, 3
      %p30 = por %p28, %p29
      %p31 = scmp.ne.s32.totalorder %s23, %s26
      %p32 = scmp.eq.s32.totalorder %s13, 0
      %p33 = por %p31, %p32
      %p34 = scmp.ne.s32.totalorder %s23, %s26
      %p35 = scmp.eq.s32.totalorder %s18, 3
      %p36 = por %p34, %p35
      %p37 = scmp.ne.s32.totalorder %s26, %s27
      %p38 = scmp.eq.s32.totalorder %s18, 0
      %p39 = por %p37, %p38
      %p40 = scmp.ne.s32.totalorder %s26, %s27
      %p41 = scmp.eq.s32.totalorder %s19, 3
      %p42 = por %p40, %p41
      %p44 = scmp.ne.s32.totalorder %s27, %s43
      %p45 = scmp.eq.s32.totalorder %s19, 0
      %p46 = por %p44, %p45
      %s48 = sadd.s32 %s47, 1
      %p51 = scmp.eq.s32.totalorder %s13, 3
      %p52 = scmp.ne.s32.totalorder %s47, %s49
      %p53 = scmp.eq.s32.totalorder %s13, 0
      %p54 = por %p52, %p53
      %p55 = scmp.ne.s32.totalorder %s47, %s49
      %p56 = scmp.eq.s32.totalorder %s18, 3
      %p57 = por %p55, %p56
      %p58 = scmp.ne.s32.totalorder %s49, %s50
      %p59 = scmp.eq.s32.totalorder %s18, 0
      %p60 = por %p58, %p59
      %p61 = scmp.ne.s32.totalorder %s49, %s50
      %p62 = scmp.eq.s32.totalorder %s19, 3
      %p63 = por %p61, %p62
      %p65 = scmp.ne.s32.totalorder %s50, %s64
      %p66 = scmp.eq.s32.totalorder %s19, 0
      %p67 = por %p65, %p66
      %s69 = sadd.s32 %s68, 1
      %p72 = scmp.eq.s32.totalorder %s13, 3
      %p73 = scmp.ne.s32.totalorder %s68, %s70
      %p74 = scmp.eq.s32.totalorder %s13, 0
      %p75 = por %p73, %p74
      %p76 = scmp.ne.s32.totalorder %s68, %s70
      %p77 = scmp.eq.s32.totalorder %s18, 3
      %p78 = por %p76, %p77
      %p79 = scmp.ne.s32.totalorder %s70, %s71
      %p80 = scmp.eq.s32.totalorder %s18, 0
      %p81 = por %p79, %p80
      %p82 = scmp.ne.s32.totalorder %s70, %s71
      %p83 = scmp.eq.s32.totalorder %s19, 3
      %p84 = por %p82, %p83
      %p86 = scmp.ne.s32.totalorder %s71, %s85
      %p87 = scmp.eq.s32.totalorder %s19, 0
      %p88 = por %p86, %p87
      %s90 = sadd.s32 %s89, 1
      %p93 = scmp.eq.s32.totalorder %s13, 3
      %p94 = scmp.ne.s32.totalorder %s89, %s91
      %p95 = scmp.eq.s32.totalorder %s13, 0
      %p96 = por %p94, %p95
      %p97 = scmp.ne.s32.totalorder %s89, %s91
      %p98 = scmp.eq.s32.totalorder %s18, 3
      %p99 = por %p97, %p98
      %p100 = scmp.ne.s32.totalorder %s91, %s92
      %p101 = scmp.eq.s32.totalorder %s18, 0
      %p102 = por %p100, %p101
      %p103 = scmp.ne.s32.totalorder %s91, %s92
      %p104 = scmp.eq.s32.totalorder %s19, 3
      %p105 = por %p103, %p104
      %p107 = scmp.ne.s32.totalorder %s92, %s106
      %p108 = scmp.eq.s32.totalorder %s19, 0
      %p109 = por %p107, %p108
      %s111 = sadd.s32 %s110, 1
      %p114 = scmp.eq.s32.totalorder %s13, 3
      %p115 = scmp.ne.s32.totalorder %s110, %s112
      %p116 = scmp.eq.s32.totalorder %s13, 0
      %p117 = por %p115, %p116
      %p118 = scmp.ne.s32.totalorder %s110, %s112
      %p119 = scmp.eq.s32.totalorder %s18, 3
      %p120 = por %p118, %p119
      %p121 = scmp.ne.s32.totalorder %s112, %s113
      %p122 = scmp.eq.s32.totalorder %s18, 0
      %p123 = por %p121, %p122
      %p124 = scmp.ne.s32.totalorder %s112, %s113
      %p125 = scmp.eq.s32.totalorder %s19, 3
      %p126 = por %p124, %p125
      %p128 = scmp.ne.s32.totalorder %s113, %s127
      %p129 = scmp.eq.s32.totalorder %s19, 0
      %p130 = por %p128, %p129
      %s132 = sadd.s32 %s131, 1
      %p135 = scmp.eq.s32.totalorder %s13, 3
      %p136 = scmp.ne.s32.totalorder %s131, %s133
      %p137 = scmp.eq.s32.totalorder %s13, 0
      %p138 = por %p136, %p137
      %p139 = scmp.ne.s32.totalorder %s131, %s133
      %p140 = scmp.eq.s32.totalorder %s18, 3
      %p141 = por %p139, %p140
      %p142 = scmp.ne.s32.totalorder %s133, %s134
      %p143 = scmp.eq.s32.totalorder %s18, 0
      %p144 = por %p142, %p143
      %p145 = scmp.ne.s32.totalorder %s133, %s134
      %p146 = scmp.eq.s32.totalorder %s19, 3
      %p147 = por %p145, %p146
      %p149 = scmp.ne.s32.totalorder %s134, %s148
      %p150 = scmp.eq.s32.totalorder %s19, 0
      %p151 = por %p149, %p150
      %s153 = sadd.s32 %s152, 1
      %p156 = scmp.eq.s32.totalorder %s13, 3
      %p157 = scmp.ne.s32.totalorder %s152, %s154
      %p158 = scmp.eq.s32.totalorder %s13, 0
      %p159 = por %p157, %p158
      %p160 = scmp.ne.s32.totalorder %s152, %s154
      %p161 = scmp.eq.s32.totalorder %s18, 3
      %p162 = por %p160, %p161
      %p163 = scmp.ne.s32.totalorder %s154, %s155
      %p164 = scmp.eq.s32.totalorder %s18, 0
      %p165 = por %p163, %p164
      %p166 = scmp.ne.s32.totalorder %s154, %s155
      %p167 = scmp.eq.s32.totalorder %s19, 3
      %p168 = por %p166, %p167
      %p170 = scmp.ne.s32.totalorder %s155, %s169
      %p171 = scmp.eq.s32.totalorder %s19, 0
      %p172 = por %p170, %p171
      %s173 = ssub.s32 %s13, %s20
      %p174 = scmp.eq.s32.totalorder %s173, 0
      %s176 = sadd.s32 %s175, 1
      %s177 = scalar_select %p174, %s175, %s176
      %p180 = pneg %p174
      %p181 = scmp.eq.s32.totalorder %s13, 3
      %p182 = por %p180, %p181
      %p183 = scmp.ne.s32.totalorder %s175, %s178
      %p184 = scmp.eq.s32.totalorder %s13, 0
      %p185 = por %p183, %p184
      %p186 = scmp.ne.s32.totalorder %s175, %s178
      %p187 = scmp.eq.s32.totalorder %s18, 3
      %p188 = por %p186, %p187
      %p189 = scmp.ne.s32.totalorder %s178, %s179
      %p190 = scmp.eq.s32.totalorder %s18, 0
      %p191 = por %p189, %p190
      %p192 = scmp.ne.s32.totalorder %s178, %s179
      %p193 = scmp.eq.s32.totalorder %s19, 3
      %p194 = por %p192, %p193
      %p196 = scmp.ne.s32.totalorder %s179, %s195
      %p197 = scmp.eq.s32.totalorder %s19, 0
      %p198 = por %p196, %p197
      %p199 = scmp.le.s32.totalorder 1, %s13
      %p200 = scmp.lt.s32.totalorder %s13, 5
      %p201 = pnand %p199, %p200
      %p202 = pneg %p201
      // Predicated region
      $region9: #{tpu_custom_call.1} parent=5 // pred_check
        _
      $region10: #{tpu_custom_call.1} parent=5 // pred_check_branch
        %204 = sbr.rel (%p201) target = $region12
      $region11: #{tpu_custom_call.1} parent=5 // pred_region
        %s205 = ssub.s32 %s13, 1
        // Predicated region
        $region13: #{tpu_custom_call.1} parent=11 // pred_check
          %p206 = pneg %p60
        $region14: #{tpu_custom_call.1} parent=11 // pred_check_branch
          %208 = sbr.rel (%p206) target = $region16
        $region15: #{tpu_custom_call.1} parent=11 // pred_region
          _
        $region16: #{tpu_custom_call.1} parent=11 // pred_fallthru
          _
        // Predicated region
        $region17: #{tpu_custom_call.1} parent=11 // pred_check
          %p209 = pneg %p81
        $region18: #{tpu_custom_call.1} parent=11 // pred_check_branch
          %211 = sbr.rel (%p209) target = $region20
        $region19: #{tpu_custom_call.1} parent=11 // pred_region
          _
        $region20: #{tpu_custom_call.1} parent=11 // pred_fallthru
          _
        // Predicated region
        $region21: #{tpu_custom_call.1} parent=11 // pred_check
          %p212 = pneg %p102
        $region22: #{tpu_custom_call.1} parent=11 // pred_check_branch
          %214 = sbr.rel (%p212) target = $region24
        $region23: #{tpu_custom_call.1} parent=11 // pred_region
          _
        $region24: #{tpu_custom_call.1} parent=11 // pred_fallthru
          _
        // Predicated region
        $region25: #{tpu_custom_call.1} parent=11 // pred_check
          %p215 = pneg %p123
        $region26: #{tpu_custom_call.1} parent=11 // pred_check_branch
          %217 = sbr.rel (%p215) target = $region28
        $region27: #{tpu_custom_call.1} parent=11 // pred_region
          _
        $region28: #{tpu_custom_call.1} parent=11 // pred_fallthru
          _
        // Predicated region
        $region29: #{tpu_custom_call.1} parent=11 // pred_check
          %p218 = pneg %p144
        $region30: #{tpu_custom_call.1} parent=11 // pred_check_branch
          %220 = sbr.rel (%p218) target = $region32
        $region31: #{tpu_custom_call.1} parent=11 // pred_region
          _
        $region32: #{tpu_custom_call.1} parent=11 // pred_fallthru
          _
        // Predicated region
        $region33: #{tpu_custom_call.1} parent=11 // pred_check
          %p221 = pneg %p165
        $region34: #{tpu_custom_call.1} parent=11 // pred_check_branch
          %223 = sbr.rel (%p221) target = $region36
        $region35: #{tpu_custom_call.1} parent=11 // pred_region
          _
        $region36: #{tpu_custom_call.1} parent=11 // pred_fallthru
          _
      $region12: #{tpu_custom_call.1} parent=5 // pred_fallthru
        _
      %p224 = scmp.lt.s32.totalorder %s13, 4
      // Predicated region
      $region37: #{tpu_custom_call.1} parent=5 // pred_check
        %p225 = pneg %p224
      $region38: #{tpu_custom_call.1} parent=5 // pred_check_branch
        %227 = sbr.rel (%p225) target = $region40
      $region39: #{tpu_custom_call.1} parent=5 // pred_region
        // Predicated region
        $region41: #{tpu_custom_call.1} parent=39 // pred_check
          %p228 = pneg %p33
        $region42: #{tpu_custom_call.1} parent=39 // pred_check_branch
          %230 = sbr.rel (%p228) target = $region44
        $region43: #{tpu_custom_call.1} parent=39 // pred_region
          %s231 = smul.u32 16, %s13
          %s232 = ssub.s32 63, %s231
          %p233 = scmp.lt.s32.totalorder %s232, 16
          %s234 = scalar_select %p233, %s232, 16
          %s235 = smul.u32 128, %s234
          %p236 = scmp.lt.s32.totalorder %s231, 62
          %s237 = scalar_select %p236, %s231, 62
          %s238 = smul.addr %s237, 8
          %s239 = scalar_lea.vmem %s0, %s238
          %s240 = smul.u32 16, %s13
          %s241 = ssub.s32 63, %s240
          %p242 = scmp.lt.s32.totalorder %s241, 16
          %s243 = scalar_select %p242, %s241, 16
          %s244 = smul.u32 128, %s243
        $region44: #{tpu_custom_call.1} parent=39 // pred_fallthru
          _
      $region40: #{tpu_custom_call.1} parent=5 // pred_fallthru
        _
      %p245 = scmp.le.s32.totalorder 1, %s13
      %p246 = scmp.lt.s32.totalorder %s13, 5
      %p247 = pnand %p245, %p246
      %p248 = pneg %p247
      // Predicated region
      $region45: #{tpu_custom_call.1} parent=5 // pred_check
        _
      $region46: #{tpu_custom_call.1} parent=5 // pred_check_branch
        %250 = sbr.rel (%p247) target = $region48
      $region47: #{tpu_custom_call.1} parent=5 // pred_region
        %s251 = ssub.s32 %s13, 1
        %s252 = smul.u32 16, %s18
        %s253 = ssub.s32 63, %s252
        %p254 = scmp.lt.s32.totalorder %s253, 16
        %s255 = scalar_select %p254, %s253, 16
        %s256 = smul.u32 128, %s255
        %p257 = scmp.lt.s32.totalorder %s252, 62
        %s258 = scalar_select %p257, %s252, 62
        %s259 = smul.addr %s258, 8
        %s260 = scalar_lea.vmem %s0, %s259
        %p261 = pneg %p39
        %p262 = pneg %p36
        %p263 = pneg %p60
        %p264 = pneg %p57
        %p265 = pneg %p81
        %p266 = pneg %p78
        %p267 = pneg %p102
        %p268 = pneg %p99
        %p269 = pneg %p123
        %p270 = pneg %p120
        %p271 = pneg %p144
        %p272 = pneg %p141
        %p273 = pneg %p165
        %p274 = pneg %p162
        %p275 = pneg %p191
        %p276 = pneg %p188
        %s277 = sand.u32 %s178, 1
        %s278 = sand.u32 %s178, 1
        %s279 = smul.addr %s278, 128
        %s280 = scalar_lea.vmem [#allocation2], %s279
        %s281 = smul.u32 16, %s18
        %s282 = ssub.s32 63, %s281
        %p283 = scmp.lt.s32.totalorder %s282, 16
        %s284 = scalar_select %p283, %s282, 16
        %s285 = smul.u32 128, %s284
        %p286 = scmp.lt.s32.totalorder %s281, 62
        %s287 = scalar_select %p286, %s281, 62
        %s288 = smul.addr %s287, 8
        %s289 = scalar_lea.vmem %s0, %s288
        %s290 = smul.u32 16, %s18
        %s291 = ssub.s32 63, %s290
        %p292 = scmp.lt.s32.totalorder %s291, 16
        %s293 = scalar_select %p292, %s291, 16
        %s294 = smul.u32 128, %s293
        %s295 = smul.u32 16, %s18
        %s296 = ssub.s32 63, %s295
        %p297 = scmp.lt.s32.totalorder %s296, 16
        %s298 = scalar_select %p297, %s296, 16
        %s299 = smul.u32 128, %s298
        %v301 = vld [vmem:[%s289] sm:$0xff]
        %v302 = vld [vmem:[%s289 + $0x8] sm:$0xff]
        %v303 = vld [vmem:[%s289 + $0x10] sm:$0xff]
        %v304 = vld [vmem:[%s289 + $0x18] sm:$0xff]
        %v305 = vld [vmem:[%s289 + $0x20] sm:$0xff]
        %v306 = vld [vmem:[%s289 + $0x28] sm:$0xff]
        %v307 = vld [vmem:[%s289 + $0x30] sm:$0xff]
        %v308 = vld [vmem:[%s289 + $0x38] sm:$0xff]
        %v309 = vld [vmem:[%s289 + $0x40] sm:$0xff]
        %v310 = vld [vmem:[%s289 + $0x48] sm:$0xff]
        %v311 = vld [vmem:[%s289 + $0x50] sm:$0xff]
        %v312 = vld [vmem:[%s289 + $0x58] sm:$0xff]
        %v313 = vld [vmem:[%s289 + $0x60] sm:$0xff]
        %v314 = vld [vmem:[%s289 + $0x68] sm:$0xff]
        %v315 = vld [vmem:[%s289 + $0x70] sm:$0xff]
        %v316 = vld [vmem:[%s289 + $0x78] sm:$0xff]
        %v317 = vpack.c.bf16 %v302, %v301
        %v318 = vpack.c.bf16 %v304, %v303
        %v319 = vpack.c.bf16 %v306, %v305
        %v320 = vpack.c.bf16 %v308, %v307
        %v321 = vpack.c.bf16 %v310, %v309
        %v322 = vpack.c.bf16 %v312, %v311
        %v323 = vpack.c.bf16 %v314, %v313
        %v324 = vpack.c.bf16 %v316, %v315
        %v325 = vld [vmem:[%s1] sm:$0xf]
        %v326 = vld [vmem:[%s1 + $0x4] sm:$0xf]
        %v327 = vld [vmem:[%s2] sm:$0x1]
        %v329 = vlaneseq
        %v330 = vshrl.u32 %v329, 7
        %v331 = vsub.s32 0, %v330
        %v332 = vrot.slane %v327, %v331
        %v336 = vunpack.c.l.b16 %v325
        %v337 = vunpack.c.l.b16 %v326
        %v338 = vpack.c.b16 %v337, %v336
        %vm340 = vcmask 130048
        %v342 = vsel %vm340, %v317, 0
        %v345 = vsel %vm340, %v318, 0
        %v348 = vsel %vm340, %v319, 0
        %v351 = vsel %vm340, %v320, 0
        %v354 = vsel %vm340, %v321, 0
        %v357 = vsel %vm340, %v322, 0
        %v360 = vsel %vm340, %v323, 0
        %v363 = vsel %vm340, %v324, 0
        %365 = vmatprep.subr.bf16.mxu0 0
        %366 = vmatpush1.bf16.msra.mxu0 %v338
        %367 = vmatprep.subr.bf16.mxu0 0
        %368 = vmatpush1.bf16.msra.mxu0 0
        %369 = vmatprep.subr.bf16.mxu0 0
        %370 = vmatpush1.bf16.msra.mxu0 0
        %371 = vmatprep.subr.bf16.mxu0 0
        %372 = vmatpush1.bf16.msra.mxu0 0
        %373 = vmatprep.subr.bf16.mxu0 0
        %374 = vmatpush1.bf16.msra.mxu0 0
        %375 = vmatprep.subr.bf16.mxu0 0
        %376 = vmatpush1.bf16.msra.mxu0 0
        %377 = vmatprep.subr.bf16.mxu0 0
        %378 = vmatpush1.bf16.msra.mxu0 0
        %379 = vmatprep.subr.bf16.mxu0 0
        %380 = vmatpush1.bf16.msra.mxu0 0
        %381 = vmatprep.subr.bf16.mxu0 0
        %382 = vmatpush1.bf16.msra.mxu0 0
        %383 = vmatprep.subr.bf16.mxu0 0
        %384 = vmatpush1.bf16.msra.mxu0 0
        %385 = vmatprep.subr.bf16.mxu0 0
        %386 = vmatpush1.bf16.msra.mxu0 0
        %387 = vmatprep.subr.bf16.mxu0 0
        %388 = vmatpush1.bf16.msra.mxu0 0
        %389 = vmatprep.subr.bf16.mxu0 0
        %390 = vmatpush1.bf16.msra.mxu0 0
        %391 = vmatprep.subr.bf16.mxu0 0
        %392 = vmatpush1.bf16.msra.mxu0 0
        %393 = vmatprep.subr.bf16.mxu0 0
        %394 = vmatpush1.bf16.msra.mxu0 0
        %395 = vmatprep.subr.bf16.mxu0 0
        %396 = vmatpush1.bf16.msra.mxu0 0
        %397 = vmatprep.mubr.bf16.mxu0 0
        %398 = vmatmul.mubr.bf16.gmra.mrb[0].mxu0 %v342
        %v399 = vpop.f32.mrb[0].mxu0
        %v400 = vadd.f32 %v332, %v399
        %v401 = vpop.f32.mrb[0].mxu0
        %v402 = vpop.f32.mrb[0].mxu0
        %v403 = vadd.f32 %v332, %v402
        %v404 = vpop.f32.mrb[0].mxu0
        %405 = vmatprep.mubr.bf16.mxu0 0
        %406 = vmatmul.mubr.bf16.gmra.mrb[0].mxu0 %v345
        %v407 = vpop.f32.mrb[0].mxu0
        %v408 = vadd.f32 %v332, %v407
        %v409 = vpop.f32.mrb[0].mxu0
        %v410 = vpop.f32.mrb[0].mxu0
        %v411 = vadd.f32 %v332, %v410
        %v412 = vpop.f32.mrb[0].mxu0
        %413 = vmatprep.mubr.bf16.mxu0 0
        %414 = vmatmul.mubr.bf16.gmra.mrb[0].mxu0 %v348
        %v415 = vpop.f32.mrb[0].mxu0
        %v416 = vadd.f32 %v332, %v415
        %v417 = vpop.f32.mrb[0].mxu0
        %v418 = vpop.f32.mrb[0].mxu0
        %v419 = vadd.f32 %v332, %v418
        %v420 = vpop.f32.mrb[0].mxu0
        %421 = vmatprep.mubr.bf16.mxu0 0
        %422 = vmatmul.mubr.bf16.gmra.mrb[0].mxu0 %v351
        %v423 = vpop.f32.mrb[0].mxu0
        %v424 = vadd.f32 %v332, %v423
        %v425 = vpop.f32.mrb[0].mxu0
        %v426 = vpop.f32.mrb[0].mxu0
        %v427 = vadd.f32 %v332, %v426
        %v428 = vpop.f32.mrb[0].mxu0
        %429 = vmatprep.mubr.bf16.mxu0 0
        %430 = vmatmul.mubr.bf16.gmra.mrb[0].mxu0 %v354
        %v431 = vpop.f32.mrb[0].mxu0
        %v432 = vadd.f32 %v332, %v431
        %v433 = vpop.f32.mrb[0].mxu0
        %v434 = vpop.f32.mrb[0].mxu0
        %v435 = vadd.f32 %v332, %v434
        %v436 = vpop.f32.mrb[0].mxu0
        %437 = vmatprep.mubr.bf16.mxu0 0
        %438 = vmatmul.mubr.bf16.gmra.mrb[0].mxu0 %v357
        %v439 = vpop.f32.mrb[0].mxu0
        %v440 = vadd.f32 %v332, %v439
        %v441 = vpop.f32.mrb[0].mxu0
        %v442 = vpop.f32.mrb[0].mxu0
        %v443 = vadd.f32 %v332, %v442
        %v444 = vpop.f32.mrb[0].mxu0
        %445 = vmatprep.mubr.bf16.mxu0 0
        %446 = vmatmul.mubr.bf16.gmra.mrb[0].mxu0 %v360
        %v447 = vpop.f32.mrb[0].mxu0
        %v448 = vadd.f32 %v332, %v447
        %v449 = vpop.f32.mrb[0].mxu0
        %v450 = vpop.f32.mrb[0].mxu0
        %v451 = vadd.f32 %v332, %v450
        %v452 = vpop.f32.mrb[0].mxu0
        %453 = vmatprep.mubr.bf16.mxu0 0
        %454 = vmatmul.mubr.bf16.gmra.mrb[0].mxu0 %v363
        %v455 = vpop.f32.mrb[0].mxu0
        %v456 = vadd.f32 %v332, %v455
        %v457 = vpop.f32.mrb[0].mxu0
        %v458 = vpop.f32.mrb[0].mxu0
        %v459 = vadd.f32 %v332, %v458
        %v460 = vpop.f32.mrb[0].mxu0
        %461 = vdwg.mxu0
        %v462 = vmax.f32 %v400, 0.0
        %v463 = vmax.f32 %v403, 0.0
        %v464 = vmax.f32 %v408, 0.0
        %v465 = vmax.f32 %v411, 0.0
        %v466 = vmax.f32 %v416, 0.0
        %v467 = vmax.f32 %v419, 0.0
        %v468 = vmax.f32 %v424, 0.0
        %v469 = vmax.f32 %v427, 0.0
        %v470 = vmax.f32 %v432, 0.0
        %v471 = vmax.f32 %v435, 0.0
        %v472 = vmax.f32 %v440, 0.0
        %v473 = vmax.f32 %v443, 0.0
        %v474 = vmax.f32 %v448, 0.0
        %v475 = vmax.f32 %v451, 0.0
        %v476 = vmax.f32 %v456, 0.0
        %v477 = vmax.f32 %v459, 0.0
        %v478 = vpack.c.bf16 %v463, %v462
        %v479 = vpack.c.bf16 %v465, %v464
        %v480 = vpack.c.bf16 %v467, %v466
        %v481 = vpack.c.bf16 %v469, %v468
        %v482 = vpack.c.bf16 %v471, %v470
        %v483 = vpack.c.bf16 %v473, %v472
        %v484 = vpack.c.bf16 %v475, %v474
        %v485 = vpack.c.bf16 %v477, %v476
        %v486 = vld [vmem:[%s3] sm:$0xf]
        %v487 = vld [vmem:[%s3 + $0x4] sm:$0xf]
        %v488 = vld [vmem:[%s3 + $0x8] sm:$0xf]
        %v489 = vld [vmem:[%s3 + $0xc] sm:$0xf]
        %v490 = vld [vmem:[%s4] sm:$0x1]
        %v492 = vlaneseq
        %v493 = vshrl.u32 %v492, 7
        %v494 = vsub.s32 0, %v493
        %v495 = vrot.slane %v490, %v494
        %v501 = vunpack.c.l.b16 %v486
        %v502 = vunpack.c.l.b16 %v487
        %v503 = vunpack.c.l.b16 %v488
        %v504 = vunpack.c.l.b16 %v489
        %v505 = vpack.c.b16 %v502, %v501
        %v506 = vpack.c.b16 %v504, %v503
        %vm509 = vcmask 261120
        %v511 = vsel %vm509, %v478, 0
        %v514 = vsel %vm509, %v479, 0
        %v517 = vsel %vm509, %v480, 0
        %v520 = vsel %vm509, %v481, 0
        %v523 = vsel %vm509, %v482, 0
        %v526 = vsel %vm509, %v483, 0
        %v529 = vsel %vm509, %v484, 0
        %v532 = vsel %vm509, %v485, 0
        %534 = vmatprep.subr.bf16.mxu0 0
        %535 = vmatpush1.bf16.msra.mxu0 %v505
        %536 = vmatprep.subr.bf16.mxu0 0
        %537 = vmatpush1.bf16.msra.mxu0 %v506
        %538 = vmatprep.subr.bf16.mxu0 0
        %539 = vmatpush1.bf16.msra.mxu0 0
        %540 = vmatprep.subr.bf16.mxu0 0
        %541 = vmatpush1.bf16.msra.mxu0 0
        %542 = vmatprep.subr.bf16.mxu0 0
        %543 = vmatpush1.bf16.msra.mxu0 0
        %544 = vmatprep.subr.bf16.mxu0 0
        %545 = vmatpush1.bf16.msra.mxu0 0
        %546 = vmatprep.subr.bf16.mxu0 0
        %547 = vmatpush1.bf16.msra.mxu0 0
        %548 = vmatprep.subr.bf16.mxu0 0
        %549 = vmatpush1.bf16.msra.mxu0 0
        %550 = vmatprep.subr.bf16.mxu0 0
        %551 = vmatpush1.bf16.msra.mxu0 0
        %552 = vmatprep.subr.bf16.mxu0 0
        %553 = vmatpush1.bf16.msra.mxu0 0
        %554 = vmatprep.subr.bf16.mxu0 0
        %555 = vmatpush1.bf16.msra.mxu0 0
        %556 = vmatprep.subr.bf16.mxu0 0
        %557 = vmatpush1.bf16.msra.mxu0 0
        %558 = vmatprep.subr.bf16.mxu0 0
        %559 = vmatpush1.bf16.msra.mxu0 0
        %560 = vmatprep.subr.bf16.mxu0 0
        %561 = vmatpush1.bf16.msra.mxu0 0
        %562 = vmatprep.subr.bf16.mxu0 0
        %563 = vmatpush1.bf16.msra.mxu0 0
        %564 = vmatprep.subr.bf16.mxu0 0
        %565 = vmatpush1.bf16.msra.mxu0 0
        %566 = vmatprep.mubr.bf16.mxu0 0
        %567 = vmatmul.mubr.bf16.gmra.mrb[0].mxu0 %v511
        %v568 = vpop.f32.mrb[0].mxu0
        %v569 = vadd.f32 %v495, %v568
        %v570 = vpop.f32.mrb[0].mxu0
        %v571 = vpop.f32.mrb[0].mxu0
        %v572 = vadd.f32 %v495, %v571
        %v573 = vpop.f32.mrb[0].mxu0
        %574 = vmatprep.mubr.bf16.mxu0 0
        %575 = vmatmul.mubr.bf16.gmra.mrb[0].mxu0 %v514
        %v576 = vpop.f32.mrb[0].mxu0
        %v577 = vadd.f32 %v495, %v576
        %v578 = vpop.f32.mrb[0].mxu0
        %v579 = vpop.f32.mrb[0].mxu0
        %v580 = vadd.f32 %v495, %v579
        %v581 = vpop.f32.mrb[0].mxu0
        %582 = vmatprep.mubr.bf16.mxu0 0
        %583 = vmatmul.mubr.bf16.gmra.mrb[0].mxu0 %v517
        %v584 = vpop.f32.mrb[0].mxu0
        %v585 = vadd.f32 %v495, %v584
        %v586 = vpop.f32.mrb[0].mxu0
        %v587 = vpop.f32.mrb[0].mxu0
        %v588 = vadd.f32 %v495, %v587
        %v589 = vpop.f32.mrb[0].mxu0
        %590 = vmatprep.mubr.bf16.mxu0 0
        %591 = vmatmul.mubr.bf16.gmra.mrb[0].mxu0 %v520
        %v592 = vpop.f32.mrb[0].mxu0
        %v593 = vadd.f32 %v495, %v592
        %v594 = vpop.f32.mrb[0].mxu0
        %v595 = vpop.f32.mrb[0].mxu0
        %v596 = vadd.f32 %v495, %v595
        %v597 = vpop.f32.mrb[0].mxu0
        %598 = vmatprep.mubr.bf16.mxu0 0
        %599 = vmatmul.mubr.bf16.gmra.mrb[0].mxu0 %v523
        %v600 = vpop.f32.mrb[0].mxu0
        %v601 = vadd.f32 %v495, %v600
        %v602 = vpop.f32.mrb[0].mxu0
        %v603 = vpop.f32.mrb[0].mxu0
        %v604 = vadd.f32 %v495, %v603
        %v605 = vpop.f32.mrb[0].mxu0
        %606 = vmatprep.mubr.bf16.mxu0 0
        %607 = vmatmul.mubr.bf16.gmra.mrb[0].mxu0 %v526
        %v608 = vpop.f32.mrb[0].mxu0
        %v609 = vadd.f32 %v495, %v608
        %v610 = vpop.f32.mrb[0].mxu0
        %v611 = vpop.f32.mrb[0].mxu0
        %v612 = vadd.f32 %v495, %v611
        %v613 = vpop.f32.mrb[0].mxu0
        %614 = vmatprep.mubr.bf16.mxu0 0
        %615 = vmatmul.mubr.bf16.gmra.mrb[0].mxu0 %v529
        %v616 = vpop.f32.mrb[0].mxu0
        %v617 = vadd.f32 %v495, %v616
        %v618 = vpop.f32.mrb[0].mxu0
        %v619 = vpop.f32.mrb[0].mxu0
        %v620 = vadd.f32 %v495, %v619
        %v621 = vpop.f32.mrb[0].mxu0
        %622 = vmatprep.mubr.bf16.mxu0 0
        %623 = vmatmul.mubr.bf16.gmra.mrb[0].mxu0 %v532
        %v624 = vpop.f32.mrb[0].mxu0
        %v625 = vadd.f32 %v495, %v624
        %v626 = vpop.f32.mrb[0].mxu0
        %v627 = vpop.f32.mrb[0].mxu0
        %v628 = vadd.f32 %v495, %v627
        %v629 = vpop.f32.mrb[0].mxu0
        %630 = vdwg.mxu0
        %vm631 = vcmask 195584
        %v632 = vsel %vm631, %v569, 0.0
        %633 = vadd.xlane.f32.xlu0 %v632
        %v634 = vpop.xlane.xlu0 %633
        %v635 = vsel %vm631, %v572, 0.0
        %636 = vadd.xlane.f32.xlu0 %v635
        %v637 = vpop.xlane.xlu0 %636
        %v638 = vsel %vm631, %v577, 0.0
        %639 = vadd.xlane.f32.xlu0 %v638
        %v640 = vpop.xlane.xlu0 %639
        %v641 = vsel %vm631, %v580, 0.0
        %642 = vadd.xlane.f32.xlu0 %v641
        %v643 = vpop.xlane.xlu0 %642
        %v644 = vsel %vm631, %v585, 0.0
        %645 = vadd.xlane.f32.xlu0 %v644
        %v646 = vpop.xlane.xlu0 %645
        %v647 = vsel %vm631, %v588, 0.0
        %648 = vadd.xlane.f32.xlu0 %v647
        %v649 = vpop.xlane.xlu0 %648
        %v650 = vsel %vm631, %v593, 0.0
        %651 = vadd.xlane.f32.xlu0 %v650
        %v652 = vpop.xlane.xlu0 %651
        %v653 = vsel %vm631, %v596, 0.0
        %654 = vadd.xlane.f32.xlu0 %v653
        %v655 = vpop.xlane.xlu0 %654
        %v656 = vsel %vm631, %v601, 0.0
        %657 = vadd.xlane.f32.xlu0 %v656
        %v658 = vpop.xlane.xlu0 %657
        %v659 = vsel %vm631, %v604, 0.0
        %660 = vadd.xlane.f32.xlu0 %v659
        %v661 = vpop.xlane.xlu0 %660
        %v662 = vsel %vm631, %v609, 0.0
        %663 = vadd.xlane.f32.xlu0 %v662
        %v664 = vpop.xlane.xlu0 %663
        %v665 = vsel %vm631, %v612, 0.0
        %666 = vadd.xlane.f32.xlu0 %v665
        %v667 = vpop.xlane.xlu0 %666
        %v668 = vsel %vm631, %v617, 0.0
        %669 = vadd.xlane.f32.xlu0 %v668
        %v670 = vpop.xlane.xlu0 %669
        %v671 = vsel %vm631, %v620, 0.0
        %672 = vadd.xlane.f32.xlu0 %v671
        %v673 = vpop.xlane.xlu0 %672
        %v674 = vsel %vm631, %v625, 0.0
        %675 = vadd.xlane.f32.xlu0 %v674
        %v676 = vpop.xlane.xlu0 %675
        %v677 = vsel %vm631, %v628, 0.0
        %678 = vadd.xlane.f32.xlu0 %v677
        %v679 = vpop.xlane.xlu0 %678
        %v680 = vmul.f32 %v634, 0.041666668
        %v681 = vmul.f32 %v637, 0.041666668
        %v682 = vmul.f32 %v640, 0.041666668
        %v683 = vmul.f32 %v643, 0.041666668
        %v684 = vmul.f32 %v646, 0.041666668
        %v685 = vmul.f32 %v649, 0.041666668
        %v686 = vmul.f32 %v652, 0.041666668
        %v687 = vmul.f32 %v655, 0.041666668
        %v688 = vmul.f32 %v658, 0.041666668
        %v689 = vmul.f32 %v661, 0.041666668
        %v690 = vmul.f32 %v664, 0.041666668
        %v691 = vmul.f32 %v667, 0.041666668
        %v692 = vmul.f32 %v670, 0.041666668
        %v693 = vmul.f32 %v673, 0.041666668
        %v694 = vmul.f32 %v676, 0.041666668
        %v695 = vmul.f32 %v679, 0.041666668
        %v696 = vmul.f32 %v569, %v569
        %v697 = vmul.f32 %v572, %v572
        %v698 = vmul.f32 %v577, %v577
        %v699 = vmul.f32 %v580, %v580
        %v700 = vmul.f32 %v585, %v585
        %v701 = vmul.f32 %v588, %v588
        %v702 = vmul.f32 %v593, %v593
        %v703 = vmul.f32 %v596, %v596
        %v704 = vmul.f32 %v601, %v601
        %v705 = vmul.f32 %v604, %v604
        %v706 = vmul.f32 %v609, %v609
        %v707 = vmul.f32 %v612, %v612
        %v708 = vmul.f32 %v617, %v617
        %v709 = vmul.f32 %v620, %v620
        %v710 = vmul.f32 %v625, %v625
        %v711 = vmul.f32 %v628, %v628
        %v712 = vsel %vm631, %v696, 0.0
        %713 = vadd.xlane.f32.xlu0 %v712
        %v714 = vpop.xlane.xlu0 %713
        %v715 = vsel %vm631, %v697, 0.0
        %716 = vadd.xlane.f32.xlu0 %v715
        %v717 = vpop.xlane.xlu0 %716
        %v718 = vsel %vm631, %v698, 0.0
        %719 = vadd.xlane.f32.xlu0 %v718
        %v720 = vpop.xlane.xlu0 %719
        %v721 = vsel %vm631, %v699, 0.0
        %722 = vadd.xlane.f32.xlu0 %v721
        %v723 = vpop.xlane.xlu0 %722
        %v724 = vsel %vm631, %v700, 0.0
        %725 = vadd.xlane.f32.xlu0 %v724
        %v726 = vpop.xlane.xlu0 %725
        %v727 = vsel %vm631, %v701, 0.0
        %728 = vadd.xlane.f32.xlu0 %v727
        %v729 = vpop.xlane.xlu0 %728
        %v730 = vsel %vm631, %v702, 0.0
        %731 = vadd.xlane.f32.xlu0 %v730
        %v732 = vpop.xlane.xlu0 %731
        %v733 = vsel %vm631, %v703, 0.0
        %734 = vadd.xlane.f32.xlu0 %v733
        %v735 = vpop.xlane.xlu0 %734
        %v736 = vsel %vm631, %v704, 0.0
        %737 = vadd.xlane.f32.xlu0 %v736
        %v738 = vpop.xlane.xlu0 %737
        %v739 = vsel %vm631, %v705, 0.0
        %740 = vadd.xlane.f32.xlu0 %v739
        %v741 = vpop.xlane.xlu0 %740
        %v742 = vsel %vm631, %v706, 0.0
        %743 = vadd.xlane.f32.xlu0 %v742
        %v744 = vpop.xlane.xlu0 %743
        %v745 = vsel %vm631, %v707, 0.0
        %746 = vadd.xlane.f32.xlu0 %v745
        %v747 = vpop.xlane.xlu0 %746
        %v748 = vsel %vm631, %v708, 0.0
        %749 = vadd.xlane.f32.xlu0 %v748
        %v750 = vpop.xlane.xlu0 %749
        %v751 = vsel %vm631, %v709, 0.0
        %752 = vadd.xlane.f32.xlu0 %v751
        %v753 = vpop.xlane.xlu0 %752
        %v754 = vsel %vm631, %v710, 0.0
        %755 = vadd.xlane.f32.xlu0 %v754
        %v756 = vpop.xlane.xlu0 %755
        %v757 = vsel %vm631, %v711, 0.0
        %758 = vadd.xlane.f32.xlu0 %v757
        %v759 = vpop.xlane.xlu0 %758
        %v760 = vmul.f32 %v714, 0.041666668
        %v761 = vmul.f32 %v717, 0.041666668
        %v762 = vmul.f32 %v720, 0.041666668
        %v763 = vmul.f32 %v723, 0.041666668
        %v764 = vmul.f32 %v726, 0.041666668
        %v765 = vmul.f32 %v729, 0.041666668
        %v766 = vmul.f32 %v732, 0.041666668
        %v767 = vmul.f32 %v735, 0.041666668
        %v768 = vmul.f32 %v738, 0.041666668
        %v769 = vmul.f32 %v741, 0.041666668
        %v770 = vmul.f32 %v744, 0.041666668
        %v771 = vmul.f32 %v747, 0.041666668
        %v772 = vmul.f32 %v750, 0.041666668
        %v773 = vmul.f32 %v753, 0.041666668
        %v774 = vmul.f32 %v756, 0.041666668
        %v775 = vmul.f32 %v759, 0.041666668
        %v776 = vmul.f32 %v680, %v680
        %v777 = vmul.f32 %v681, %v681
        %v778 = vmul.f32 %v682, %v682
        %v779 = vmul.f32 %v683, %v683
        %v780 = vmul.f32 %v684, %v684
        %v781 = vmul.f32 %v685, %v685
        %v782 = vmul.f32 %v686, %v686
        %v783 = vmul.f32 %v687, %v687
        %v784 = vmul.f32 %v688, %v688
        %v785 = vmul.f32 %v689, %v689
        %v786 = vmul.f32 %v690, %v690
        %v787 = vmul.f32 %v691, %v691
        %v788 = vmul.f32 %v692, %v692
        %v789 = vmul.f32 %v693, %v693
        %v790 = vmul.f32 %v694, %v694
        %v791 = vmul.f32 %v695, %v695
        %v792 = vsub.f32 %v760, %v776
        %v793 = vsub.f32 %v761, %v777
        %v794 = vsub.f32 %v762, %v778
        %v795 = vsub.f32 %v763, %v779
        %v796 = vsub.f32 %v764, %v780
        %v797 = vsub.f32 %v765, %v781
        %v798 = vsub.f32 %v766, %v782
        %v799 = vsub.f32 %v767, %v783
        %v800 = vsub.f32 %v768, %v784
        %v801 = vsub.f32 %v769, %v785
        %v802 = vsub.f32 %v770, %v786
        %v803 = vsub.f32 %v771, %v787
        %v804 = vsub.f32 %v772, %v788
        %v805 = vsub.f32 %v773, %v789
        %v806 = vsub.f32 %v774, %v790
        %v807 = vsub.f32 %v775, %v791
        %v808 = vsub.f32 %v569, %v680
        %v809 = vsub.f32 %v572, %v681
        %v810 = vsub.f32 %v577, %v682
        %v811 = vsub.f32 %v580, %v683
        %v812 = vsub.f32 %v585, %v684
        %v813 = vsub.f32 %v588, %v685
        %v814 = vsub.f32 %v593, %v686
        %v815 = vsub.f32 %v596, %v687
        %v816 = vsub.f32 %v601, %v688
        %v817 = vsub.f32 %v604, %v689
        %v818 = vsub.f32 %v609, %v690
        %v819 = vsub.f32 %v612, %v691
        %v820 = vsub.f32 %v617, %v692
        %v821 = vsub.f32 %v620, %v693
        %v822 = vsub.f32 %v625, %v694
        %v823 = vsub.f32 %v628, %v695
        %v824 = vmax.f32 %v792, 0.0
        %v825 = vmax.f32 %v793, 0.0
        %v826 = vmax.f32 %v794, 0.0
        %v827 = vmax.f32 %v795, 0.0
        %v828 = vmax.f32 %v796, 0.0
        %v829 = vmax.f32 %v797, 0.0
        %v830 = vmax.f32 %v798, 0.0
        %v831 = vmax.f32 %v799, 0.0
        %v832 = vmax.f32 %v800, 0.0
        %v833 = vmax.f32 %v801, 0.0
        %v834 = vmax.f32 %v802, 0.0
        %v835 = vmax.f32 %v803, 0.0
        %v836 = vmax.f32 %v804, 0.0
        %v837 = vmax.f32 %v805, 0.0
        %v838 = vmax.f32 %v806, 0.0
        %v839 = vmax.f32 %v807, 0.0
        %v840 = vadd.f32 %v824, 1e-05
        %v841 = vadd.f32 %v825, 1e-05
        %v842 = vadd.f32 %v826, 1e-05
        %v843 = vadd.f32 %v827, 1e-05
        %v844 = vadd.f32 %v828, 1e-05
        %v845 = vadd.f32 %v829, 1e-05
        %v846 = vadd.f32 %v830, 1e-05
        %v847 = vadd.f32 %v831, 1e-05
        %v848 = vadd.f32 %v832, 1e-05
        %v849 = vadd.f32 %v833, 1e-05
        %v850 = vadd.f32 %v834, 1e-05
        %v851 = vadd.f32 %v835, 1e-05
        %v852 = vadd.f32 %v836, 1e-05
        %v853 = vadd.f32 %v837, 1e-05
        %v854 = vadd.f32 %v838, 1e-05
        %v855 = vadd.f32 %v839, 1e-05
        %v856 = vrsqrt.pop %v840
        %v857 = vrsqrt.pop %v841
        %v858 = vrsqrt.pop %v842
        %v859 = vrsqrt.pop %v843
        %v860 = vrsqrt.pop %v844
        %v861 = vrsqrt.pop %v845
        %v862 = vrsqrt.pop %v846
        %v863 = vrsqrt.pop %v847
        %v864 = vrsqrt.pop %v848
        %v865 = vrsqrt.pop %v849
        %v866 = vrsqrt.pop %v850
        %v867 = vrsqrt.pop %v851
        %v868 = vrsqrt.pop %v852
        %v869 = vrsqrt.pop %v853
        %v870 = vrsqrt.pop %v854
        %v871 = vrsqrt.pop %v855
        %v872 = vmul.f32 %v808, %v856
        %v873 = vmul.f32 %v809, %v857
        %v874 = vmul.f32 %v810, %v858
        %v875 = vmul.f32 %v811, %v859
        %v876 = vmul.f32 %v812, %v860
        %v877 = vmul.f32 %v813, %v861
        %v878 = vmul.f32 %v814, %v862
        %v879 = vmul.f32 %v815, %v863
        %v880 = vmul.f32 %v816, %v864
        %v881 = vmul.f32 %v817, %v865
        %v882 = vmul.f32 %v818, %v866
        %v883 = vmul.f32 %v819, %v867
        %v884 = vmul.f32 %v820, %v868
        %v885 = vmul.f32 %v821, %v869
        %v886 = vmul.f32 %v822, %v870
        %v887 = vmul.f32 %v823, %v871
        %v888 = vld [vmem:[%s5] sm:$0x1]
        %v890 = vlaneseq
        %v891 = vshrl.u32 %v890, 7
        %v892 = vsub.s32 0, %v891
        %v893 = vrot.slane %v888, %v892
        %v895 = vmul.f32 %v872, %v893
        %v896 = vmul.f32 %v873, %v893
        %v897 = vmul.f32 %v874, %v893
        %v898 = vmul.f32 %v875, %v893
        %v899 = vmul.f32 %v876, %v893
        %v900 = vmul.f32 %v877, %v893
        %v901 = vmul.f32 %v878, %v893
        %v902 = vmul.f32 %v879, %v893
        %v903 = vmul.f32 %v880, %v893
        %v904 = vmul.f32 %v881, %v893
        %v905 = vmul.f32 %v882, %v893
        %v906 = vmul.f32 %v883, %v893
        %v907 = vmul.f32 %v884, %v893
        %v908 = vmul.f32 %v885, %v893
        %v909 = vmul.f32 %v886, %v893
        %v910 = vmul.f32 %v887, %v893
        %v911 = vld [vmem:[%s6] sm:$0x1]
        %v913 = vlaneseq
        %v914 = vshrl.u32 %v913, 7
        %v915 = vsub.s32 0, %v914
        %v916 = vrot.slane %v911, %v915
        %v918 = vadd.f32 %v895, %v916
        %v919 = vadd.f32 %v896, %v916
        %v920 = vadd.f32 %v897, %v916
        %v921 = vadd.f32 %v898, %v916
        %v922 = vadd.f32 %v899, %v916
        %v923 = vadd.f32 %v900, %v916
        %v924 = vadd.f32 %v901, %v916
        %v925 = vadd.f32 %v902, %v916
        %v926 = vadd.f32 %v903, %v916
        %v927 = vadd.f32 %v904, %v916
        %v928 = vadd.f32 %v905, %v916
        %v929 = vadd.f32 %v906, %v916
        %v930 = vadd.f32 %v907, %v916
        %v931 = vadd.f32 %v908, %v916
        %v932 = vadd.f32 %v909, %v916
        %v933 = vadd.f32 %v910, %v916
        %v934 = vmul.f32 %v918, %v918
        %v935 = vmul.f32 %v919, %v919
        %v936 = vmul.f32 %v920, %v920
        %v937 = vmul.f32 %v921, %v921
        %v938 = vmul.f32 %v922, %v922
        %v939 = vmul.f32 %v923, %v923
        %v940 = vmul.f32 %v924, %v924
        %v941 = vmul.f32 %v925, %v925
        %v942 = vmul.f32 %v926, %v926
        %v943 = vmul.f32 %v927, %v927
        %v944 = vmul.f32 %v928, %v928
        %v945 = vmul.f32 %v929, %v929
        %v946 = vmul.f32 %v930, %v930
        %v947 = vmul.f32 %v931, %v931
        %v948 = vmul.f32 %v932, %v932
        %v949 = vmul.f32 %v933, %v933
        %v950 = vsel %vm631, %v934, 0.0
        %951 = vadd.xlane.f32.xlu0 %v950
        %v952 = vpop.xlane.xlu0 %951
        %v953 = vsel %vm631, %v935, 0.0
        %954 = vadd.xlane.f32.xlu0 %v953
        %v955 = vpop.xlane.xlu0 %954
        %v956 = vsel %vm631, %v936, 0.0
        %957 = vadd.xlane.f32.xlu0 %v956
        %v958 = vpop.xlane.xlu0 %957
        %v959 = vsel %vm631, %v937, 0.0
        %960 = vadd.xlane.f32.xlu0 %v959
        %v961 = vpop.xlane.xlu0 %960
        %v962 = vsel %vm631, %v938, 0.0
        %963 = vadd.xlane.f32.xlu0 %v962
        %v964 = vpop.xlane.xlu0 %963
        %v965 = vsel %vm631, %v939, 0.0
        %966 = vadd.xlane.f32.xlu0 %v965
        %v967 = vpop.xlane.xlu0 %966
        %v968 = vsel %vm631, %v940, 0.0
        %969 = vadd.xlane.f32.xlu0 %v968
        %v970 = vpop.xlane.xlu0 %969
        %v971 = vsel %vm631, %v941, 0.0
        %972 = vadd.xlane.f32.xlu0 %v971
        %v973 = vpop.xlane.xlu0 %972
        %v974 = vsel %vm631, %v942, 0.0
        %975 = vadd.xlane.f32.xlu0 %v974
        %v976 = vpop.xlane.xlu0 %975
        %v977 = vsel %vm631, %v943, 0.0
        %978 = vadd.xlane.f32.xlu0 %v977
        %v979 = vpop.xlane.xlu0 %978
        %v980 = vsel %vm631, %v944, 0.0
        %981 = vadd.xlane.f32.xlu0 %v980
        %v982 = vpop.xlane.xlu0 %981
        %v983 = vsel %vm631, %v945, 0.0
        %984 = vadd.xlane.f32.xlu0 %v983
        %v985 = vpop.xlane.xlu0 %984
        %v986 = vsel %vm631, %v946, 0.0
        %987 = vadd.xlane.f32.xlu0 %v986
        %v988 = vpop.xlane.xlu0 %987
        %v989 = vsel %vm631, %v947, 0.0
        %990 = vadd.xlane.f32.xlu0 %v989
        %v991 = vpop.xlane.xlu0 %990
        %v992 = vsel %vm631, %v948, 0.0
        %993 = vadd.xlane.f32.xlu0 %v992
        %v994 = vpop.xlane.xlu0 %993
        %v995 = vsel %vm631, %v949, 0.0
        %996 = vadd.xlane.f32.xlu0 %v995
        %v997 = vpop.xlane.xlu0 %996
        %v998 = vmax.f32 %v952, 1e-24
        %v999 = vmax.f32 %v955, 1e-24
        %v1000 = vmax.f32 %v958, 1e-24
        %v1001 = vmax.f32 %v961, 1e-24
        %v1002 = vmax.f32 %v964, 1e-24
        %v1003 = vmax.f32 %v967, 1e-24
        %v1004 = vmax.f32 %v970, 1e-24
        %v1005 = vmax.f32 %v973, 1e-24
        %v1006 = vmax.f32 %v976, 1e-24
        %v1007 = vmax.f32 %v979, 1e-24
        %v1008 = vmax.f32 %v982, 1e-24
        %v1009 = vmax.f32 %v985, 1e-24
        %v1010 = vmax.f32 %v988, 1e-24
        %v1011 = vmax.f32 %v991, 1e-24
        %v1012 = vmax.f32 %v994, 1e-24
        %v1013 = vmax.f32 %v997, 1e-24
        %v1014 = vrsqrt.pop %v998
        %v1015 = vrsqrt.pop %v999
        %v1016 = vrsqrt.pop %v1000
        %v1017 = vrsqrt.pop %v1001
        %v1018 = vrsqrt.pop %v1002
        %v1019 = vrsqrt.pop %v1003
        %v1020 = vrsqrt.pop %v1004
        %v1021 = vrsqrt.pop %v1005
        %v1022 = vrsqrt.pop %v1006
        %v1023 = vrsqrt.pop %v1007
        %v1024 = vrsqrt.pop %v1008
        %v1025 = vrsqrt.pop %v1009
        %v1026 = vrsqrt.pop %v1010
        %v1027 = vrsqrt.pop %v1011
        %v1028 = vrsqrt.pop %v1012
        %v1029 = vrsqrt.pop %v1013
        %v1030 = vmul.f32 %v918, %v1014
        %v1031 = vmul.f32 %v919, %v1015
        %v1032 = vmul.f32 %v920, %v1016
        %v1033 = vmul.f32 %v921, %v1017
        %v1034 = vmul.f32 %v922, %v1018
        %v1035 = vmul.f32 %v923, %v1019
        %v1036 = vmul.f32 %v924, %v1020
        %v1037 = vmul.f32 %v925, %v1021
        %v1038 = vmul.f32 %v926, %v1022
        %v1039 = vmul.f32 %v927, %v1023
        %v1040 = vmul.f32 %v928, %v1024
        %v1041 = vmul.f32 %v929, %v1025
        %v1042 = vmul.f32 %v930, %v1026
        %v1043 = vmul.f32 %v931, %v1027
        %v1044 = vmul.f32 %v932, %v1028
        %v1045 = vmul.f32 %v933, %v1029
        %1046 = vst.msk [vmem:[%s280] sm:$0xff] %vm631, %v1030
        %1047 = vst.msk [vmem:[%s280 + $0x8] sm:$0xff] %vm631, %v1031
        %1048 = vst.msk [vmem:[%s280 + $0x10] sm:$0xff] %vm631, %v1032
        %1049 = vst.msk [vmem:[%s280 + $0x18] sm:$0xff] %vm631, %v1033
        %1050 = vst.msk [vmem:[%s280 + $0x20] sm:$0xff] %vm631, %v1034
        %1051 = vst.msk [vmem:[%s280 + $0x28] sm:$0xff] %vm631, %v1035
        %1052 = vst.msk [vmem:[%s280 + $0x30] sm:$0xff] %vm631, %v1036
        %1053 = vst.msk [vmem:[%s280 + $0x38] sm:$0xff] %vm631, %v1037
        %1054 = vst.msk [vmem:[%s280 + $0x40] sm:$0xff] %vm631, %v1038
        %1055 = vst.msk [vmem:[%s280 + $0x48] sm:$0xff] %vm631, %v1039
        %1056 = vst.msk [vmem:[%s280 + $0x50] sm:$0xff] %vm631, %v1040
        %1057 = vst.msk [vmem:[%s280 + $0x58] sm:$0xff] %vm631, %v1041
        %1058 = vst.msk [vmem:[%s280 + $0x60] sm:$0xff] %vm631, %v1042
        %1059 = vst.msk [vmem:[%s280 + $0x68] sm:$0xff] %vm631, %v1043
        %1060 = vst.msk [vmem:[%s280 + $0x70] sm:$0xff] %vm631, %v1044
        %1061 = vst.msk [vmem:[%s280 + $0x78] sm:$0xff] %vm631, %v1045
        %s1062 = sand.u32 %s178, 1
        %s1063 = sand.u32 %s178, 1
        %s1064 = smul.addr %s1063, 128
        %s1065 = scalar_lea.vmem [#allocation2], %s1064
        // Predicated region
        $region49: #{tpu_custom_call.1} parent=47 // pred_check
          %p1066 = pneg %p188
        $region50: #{tpu_custom_call.1} parent=47 // pred_check_branch
          %1068 = sbr.rel (%p1066) target = $region52
        $region51: #{tpu_custom_call.1} parent=47 // pred_region
          %s1069 = smul.u32 16, %s18
          %s1070 = ssub.s32 63, %s1069
          %p1071 = scmp.lt.s32.totalorder %s1070, 16
          %s1072 = scalar_select %p1071, %s1070, 16
          %s1073 = smul.u32 128, %s1072
          %p1074 = scmp.ne.s32.totalorder 0, %s1073
          %s1075 = smul.addr %s1069, 8
          %s1076 = scalar_lea.vmem %s7, %s1075
          // Predicated region
          $region53: #{tpu_custom_call.1} parent=51 // pred_check
            %p1077 = pneg %p1074
          $region54: #{tpu_custom_call.1} parent=51 // pred_check_branch
            %1079 = sbr.rel (%p1077) target = $region56
          $region55: #{tpu_custom_call.1} parent=51 // pred_region
            // Predicated region
            $region57: #{tpu_custom_call.1} parent=55 // pred_check
              _
            $region58: #{tpu_custom_call.1} parent=55 // pred_check_branch
              %1081 = sbr.rel (0) target = $region60
            $region59: #{tpu_custom_call.1} parent=55 // pred_region
              // Predicated region
              $region79: #{tpu_custom_call.1} parent=59 // pred_check
                _
              $region80: #{tpu_custom_call.1} parent=59 // pred_check_branch
                %1160 = sbr.rel (0) target = $region82
              $region81: #{tpu_custom_call.1} parent=59 // pred_region
                %s1161 = sshrl.u32 %s1072, 4
                // While loop
                $region83: #{tpu_custom_call.1} parent=81 // loop_pre_header
                  _
                $region84: #{tpu_custom_call.1} parent=81 // loop_header
                  %s1163 = sphi 0, %s1165
                  %p1164 = scmp.ge.s32.totalorder %s1163, %s1161
                  %s1168 = sphi 0, %s1205
                  %s1169 = sphi %s1065, %s1208
                  %s1170 = sphi %s1076, %s1209
                $region85: #{tpu_custom_call.1} parent=81 // loop_header_branch
                  %1167 = sbr.rel (%p1164) target = $region89
                $region86: #{tpu_custom_call.1} parent=81 // loop_body
                  %v1171 = vld [vmem:[%s1169] sm:$0xff]
                  %1172 = vst [vmem:[%s1170] sm:$0xff] %v1171
                  %v1173 = vld [vmem:[%s1169 + $0x8] sm:$0xff]
                  %1174 = vst [vmem:[%s1170 + $0x8] sm:$0xff] %v1173
                  %v1175 = vld [vmem:[%s1169 + $0x10] sm:$0xff]
                  %1176 = vst [vmem:[%s1170 + $0x10] sm:$0xff] %v1175
                  %v1177 = vld [vmem:[%s1169 + $0x18] sm:$0xff]
                  %1178 = vst [vmem:[%s1170 + $0x18] sm:$0xff] %v1177
                  %v1179 = vld [vmem:[%s1169 + $0x20] sm:$0xff]
                  %1180 = vst [vmem:[%s1170 + $0x20] sm:$0xff] %v1179
                  %v1181 = vld [vmem:[%s1169 + $0x28] sm:$0xff]
                  %1182 = vst [vmem:[%s1170 + $0x28] sm:$0xff] %v1181
                  %v1183 = vld [vmem:[%s1169 + $0x30] sm:$0xff]
                  %1184 = vst [vmem:[%s1170 + $0x30] sm:$0xff] %v1183
                  %v1185 = vld [vmem:[%s1169 + $0x38] sm:$0xff]
                  %1186 = vst [vmem:[%s1170 + $0x38] sm:$0xff] %v1185
                  %v1187 = vld [vmem:[%s1169 + $0x40] sm:$0xff]
                  %1188 = vst [vmem:[%s1170 + $0x40] sm:$0xff] %v1187
                  %v1189 = vld [vmem:[%s1169 + $0x48] sm:$0xff]
                  %1190 = vst [vmem:[%s1170 + $0x48] sm:$0xff] %v1189
                  %v1191 = vld [vmem:[%s1169 + $0x50] sm:$0xff]
                  %1192 = vst [vmem:[%s1170 + $0x50] sm:$0xff] %v1191
                  %v1193 = vld [vmem:[%s1169 + $0x58] sm:$0xff]
                  %1194 = vst [vmem:[%s1170 + $0x58] sm:$0xff] %v1193
                  %v1195 = vld [vmem:[%s1169 + $0x60] sm:$0xff]
                  %1196 = vst [vmem:[%s1170 + $0x60] sm:$0xff] %v1195
                  %v1197 = vld [vmem:[%s1169 + $0x68] sm:$0xff]
                  %1198 = vst [vmem:[%s1170 + $0x68] sm:$0xff] %v1197
                  %v1199 = vld [vmem:[%s1169 + $0x70] sm:$0xff]
                  %1200 = vst [vmem:[%s1170 + $0x70] sm:$0xff] %v1199
                  %v1201 = vld [vmem:[%s1169 + $0x78] sm:$0xff]
                  %1202 = vst [vmem:[%s1170 + $0x78] sm:$0xff] %v1201
                  %s1203 = sadd.s32 1, %s1168
                  %p1204 = scmp.ge.s32.totalorder %s1203, %s1161
                  %s1205 = scalar_select %p1204, 0, %s1203
                  %s1206 = smul.u32 %s1205, 128
                  %s1207 = smul.u32 %s1205, 128
                  %s1208 = scalar_lea.vmem %s1065, %s1206 [#allocation2]
                  %s1209 = scalar_lea.vmem %s1076, %s1207
                $region87: #{tpu_custom_call.1} parent=81 // loop_footer
                  %s1165 = sadd.s32 %s1163, 1
                $region88: #{tpu_custom_call.1} parent=81 // loop_footer_branch
                  %1162 = sbr.rel target = $region84
                $region89: #{tpu_custom_call.1} parent=81 // loop_exit
                  _
                %s1210 = sshrl.u32 %s1072, 4
                %s1211 = sand.u32 %s1072, 15
                %s1212 = smul.u32 %s1210, 16
                %s1213 = smul.u32 8, %s1212
                %s1214 = scalar_lea.vmem %s1065, %s1213 [#allocation2]
                %s1215 = smul.u32 8, %s1212
                %s1216 = scalar_lea.vmem %s1076, %s1215
                // While loop
                $region90: #{tpu_custom_call.1} parent=81 // loop_pre_header
                  _
                $region91: #{tpu_custom_call.1} parent=81 // loop_header
                  %s1218 = sphi 0, %s1220
                  %p1219 = scmp.ge.s32.totalorder %s1218, %s1211
                  %s1223 = sphi 0, %s1230
                  %s1224 = sphi %s1214, %s1233
                  %s1225 = sphi %s1216, %s1234
                $region92: #{tpu_custom_call.1} parent=81 // loop_header_branch
                  %1222 = sbr.rel (%p1219) target = $region96
                $region93: #{tpu_custom_call.1} parent=81 // loop_body
                  %v1226 = vld [vmem:[%s1224] sm:$0xff]
                  %1227 = vst [vmem:[%s1225] sm:$0xff] %v1226
                  %s1228 = sadd.s32 1, %s1223
                  %p1229 = scmp.ge.s32.totalorder %s1228, %s1211
                  %s1230 = scalar_select %p1229, 0, %s1228
                  %s1231 = smul.u32 %s1230, 8
                  %s1232 = smul.u32 %s1230, 8
                  %s1233 = scalar_lea.vmem %s1214, %s1231 [#allocation2]
                  %s1234 = scalar_lea.vmem %s1216, %s1232
                $region94: #{tpu_custom_call.1} parent=81 // loop_footer
                  %s1220 = sadd.s32 %s1218, 1
                $region95: #{tpu_custom_call.1} parent=81 // loop_footer_branch
                  %1217 = sbr.rel target = $region91
                $region96: #{tpu_custom_call.1} parent=81 // loop_exit
                  _
              $region82: #{tpu_custom_call.1} parent=59 // pred_fallthru
                _
              // Predicated region
              $region97: #{tpu_custom_call.1} parent=59 // pred_check
                _
              $region98: #{tpu_custom_call.1} parent=59 // pred_check_branch
                %1236 = sbr.rel target = $region100
              $region99: #{tpu_custom_call.1} parent=59 // pred_region
                _
              $region100: #{tpu_custom_call.1} parent=59 // pred_fallthru
                _
            $region60: #{tpu_custom_call.1} parent=55 // pred_fallthru
              _
            // Predicated region
            $region61: #{tpu_custom_call.1} parent=55 // pred_check
              _
            $region62: #{tpu_custom_call.1} parent=55 // pred_check_branch
              %1083 = sbr.rel target = $region64
            $region63: #{tpu_custom_call.1} parent=55 // pred_region
              %s1085 = sshrl.u32 %s1072, 4
              // While loop
              $region65: #{tpu_custom_call.1} parent=63 // loop_pre_header
                _
              $region66: #{tpu_custom_call.1} parent=63 // loop_header
                %s1087 = sphi 0, %s1089
                %p1088 = scmp.ge.s32.totalorder %s1087, %s1085
                %s1092 = sphi 0, %s1129
                %s1093 = sphi %s1065, %s1132
                %s1094 = sphi %s1076, %s1133
              $region67: #{tpu_custom_call.1} parent=63 // loop_header_branch
                %1091 = sbr.rel (%p1088) target = $region71
              $region68: #{tpu_custom_call.1} parent=63 // loop_body
                %v1095 = vld [vmem:[%s1093] sm:$0xff]
                %1096 = vst [vmem:[%s1094] sm:$0xff] %v1095
                %v1097 = vld [vmem:[%s1093 + $0x8] sm:$0xff]
                %1098 = vst [vmem:[%s1094 + $0x8] sm:$0xff] %v1097
                %v1099 = vld [vmem:[%s1093 + $0x10] sm:$0xff]
                %1100 = vst [vmem:[%s1094 + $0x10] sm:$0xff] %v1099
                %v1101 = vld [vmem:[%s1093 + $0x18] sm:$0xff]
                %1102 = vst [vmem:[%s1094 + $0x18] sm:$0xff] %v1101
                %v1103 = vld [vmem:[%s1093 + $0x20] sm:$0xff]
                %1104 = vst [vmem:[%s1094 + $0x20] sm:$0xff] %v1103
                %v1105 = vld [vmem:[%s1093 + $0x28] sm:$0xff]
                %1106 = vst [vmem:[%s1094 + $0x28] sm:$0xff] %v1105
                %v1107 = vld [vmem:[%s1093 + $0x30] sm:$0xff]
                %1108 = vst [vmem:[%s1094 + $0x30] sm:$0xff] %v1107
                %v1109 = vld [vmem:[%s1093 + $0x38] sm:$0xff]
                %1110 = vst [vmem:[%s1094 + $0x38] sm:$0xff] %v1109
                %v1111 = vld [vmem:[%s1093 + $0x40] sm:$0xff]
                %1112 = vst [vmem:[%s1094 + $0x40] sm:$0xff] %v1111
                %v1113 = vld [vmem:[%s1093 + $0x48] sm:$0xff]
                %1114 = vst [vmem:[%s1094 + $0x48] sm:$0xff] %v1113
                %v1115 = vld [vmem:[%s1093 + $0x50] sm:$0xff]
                %1116 = vst [vmem:[%s1094 + $0x50] sm:$0xff] %v1115
                %v1117 = vld [vmem:[%s1093 + $0x58] sm:$0xff]
                %1118 = vst [vmem:[%s1094 + $0x58] sm:$0xff] %v1117
                %v1119 = vld [vmem:[%s1093 + $0x60] sm:$0xff]
                %1120 = vst [vmem:[%s1094 + $0x60] sm:$0xff] %v1119
                %v1121 = vld [vmem:[%s1093 + $0x68] sm:$0xff]
                %1122 = vst [vmem:[%s1094 + $0x68] sm:$0xff] %v1121
                %v1123 = vld [vmem:[%s1093 + $0x70] sm:$0xff]
                %1124 = vst [vmem:[%s1094 + $0x70] sm:$0xff] %v1123
                %v1125 = vld [vmem:[%s1093 + $0x78] sm:$0xff]
                %1126 = vst [vmem:[%s1094 + $0x78] sm:$0xff] %v1125
                %s1127 = sadd.s32 1, %s1092
                %p1128 = scmp.ge.s32.totalorder %s1127, %s1085
                %s1129 = scalar_select %p1128, 0, %s1127
                %s1130 = smul.u32 %s1129, 128
                %s1131 = smul.u32 %s1129, 128
                %s1132 = scalar_lea.vmem %s1065, %s1130 [#allocation2]
                %s1133 = scalar_lea.vmem %s1076, %s1131
              $region69: #{tpu_custom_call.1} parent=63 // loop_footer
                %s1089 = sadd.s32 %s1087, 1
              $region70: #{tpu_custom_call.1} parent=63 // loop_footer_branch
                %1086 = sbr.rel target = $region66
              $region71: #{tpu_custom_call.1} parent=63 // loop_exit
                _
              %s1134 = sshrl.u32 %s1072, 4
              %s1135 = sand.u32 %s1072, 15
              %s1136 = smul.u32 %s1134, 16
              %s1137 = smul.u32 8, %s1136
              %s1138 = scalar_lea.vmem %s1065, %s1137 [#allocation2]
              %s1139 = smul.u32 8, %s1136
              %s1140 = scalar_lea.vmem %s1076, %s1139
              // While loop
              $region72: #{tpu_custom_call.1} parent=63 // loop_pre_header
                _
              $region73: #{tpu_custom_call.1} parent=63 // loop_header
                %s1142 = sphi 0, %s1144
                %p1143 = scmp.ge.s32.totalorder %s1142, %s1135
                %s1147 = sphi 0, %s1154
                %s1148 = sphi %s1138, %s1157
                %s1149 = sphi %s1140, %s1158
              $region74: #{tpu_custom_call.1} parent=63 // loop_header_branch
                %1146 = sbr.rel (%p1143) target = $region78
              $region75: #{tpu_custom_call.1} parent=63 // loop_body
                %v1150 = vld [vmem:[%s1148] sm:$0xff]
                %1151 = vst [vmem:[%s1149] sm:$0xff] %v1150
                %s1152 = sadd.s32 1, %s1147
                %p1153 = scmp.ge.s32.totalorder %s1152, %s1135
                %s1154 = scalar_select %p1153, 0, %s1152
                %s1155 = smul.u32 %s1154, 8
                %s1156 = smul.u32 %s1154, 8
                %s1157 = scalar_lea.vmem %s1138, %s1155 [#allocation2]
                %s1158 = scalar_lea.vmem %s1140, %s1156
              $region76: #{tpu_custom_call.1} parent=63 // loop_footer
                %s1144 = sadd.s32 %s1142, 1
              $region77: #{tpu_custom_call.1} parent=63 // loop_footer_branch
                %1141 = sbr.rel target = $region73
              $region78: #{tpu_custom_call.1} parent=63 // loop_exit
                _
            $region64: #{tpu_custom_call.1} parent=55 // pred_fallthru
              _
          $region56: #{tpu_custom_call.1} parent=51 // pred_fallthru
            _
          %1237 = vnop
        $region52: #{tpu_custom_call.1} parent=47 // pred_fallthru
          _
      $region48: #{tpu_custom_call.1} parent=5 // pred_fallthru
        _
      %p1238 = scmp.le.s32.totalorder 2, %s13
      // Predicated region
      $region101: #{tpu_custom_call.1} parent=5 // pred_check
        %p1239 = pneg %p1238
      $region102: #{tpu_custom_call.1} parent=5 // pred_check_branch
        %1241 = sbr.rel (%p1239) target = $region104
      $region103: #{tpu_custom_call.1} parent=5 // pred_region
        %s1242 = ssub.s32 %s13, 2
        // Predicated region
        $region105: #{tpu_custom_call.1} parent=103 // pred_check
          %p1243 = pneg %p194
        $region106: #{tpu_custom_call.1} parent=103 // pred_check_branch
          %1245 = sbr.rel (%p1243) target = $region108
        $region107: #{tpu_custom_call.1} parent=103 // pred_region
          %s1246 = sand.u32 %s179, 1
          %s1247 = sand.u32 %s179, 1
          %s1248 = smul.addr %s1247, 128
          %s1249 = scalar_lea.vmem [#allocation2], %s1248
        $region108: #{tpu_custom_call.1} parent=103 // pred_fallthru
          _
      $region104: #{tpu_custom_call.1} parent=5 // pred_fallthru
        _
    $region6: #{tpu_custom_call.1} parent=1 // loop_footer
      %s17 = sadd.s32 1, %s13
    $region7: #{tpu_custom_call.1} parent=1 // loop_footer_branch
      %12 = sbr.rel target = $region3
    $region8: #{tpu_custom_call.1} parent=1 // loop_exit
      _

</llo_original>
